<compile_context>
chip_gen: v7x
topology: tpu7x:2x2x1
jax: 0.10.0
libtpu: 0.0.40
codegen_flags: <defaults>
</compile_context>

<pallas_src>
import functools

import jax
import jax.numpy as jnp
from jax.experimental import pallas as pl
from jax.experimental.pallas import tpu as pltpu


# ----------------------------- kernel-side math ------------------------------

def _layer_norm(x, gamma, beta, eps=1e-5):
    # fp32 LayerNorm (matches the fp16-safe LayerNorm subclass: compute in f32).
    xf = x.astype(jnp.float32)
    mu = jnp.mean(xf, axis=-1, keepdims=True)
    var = jnp.mean((xf - mu) ** 2, axis=-1, keepdims=True)
    y = (xf - mu) * jax.lax.rsqrt(var + eps)
    return y * gamma + beta            # stays f32


def _quick_gelu(x):
    return x * jax.nn.sigmoid(1.702 * x)


def _attn_residual(n_head, approx_recip, tile,
                   x_full_ref,
                   ln1_g_ref, ln1_b_ref,
                   wq_ref, bq_ref, wk_ref, bk_ref, wv_ref, bv_ref,
                   wo_ref, bo_ref,
                   xn_scr, k_scr, v_scr, ctx_scr):
    """Returns the (tile, D) f32 slab  x + MHA(ln_1(x))  for the current row tile.

    ln_1(x), K and V for the FULL sequence are computed once per batch index
    (under pl.when(tile_idx == 0)) into VMEM scratch; query tiles reuse them.
    The row-tile grid axis must therefore be "arbitrary" (sequential).
    """
    ti = pl.program_id(1)
    dt = wq_ref.dtype                      # matmul operand dtype (f32 or bf16)
    D = x_full_ref.shape[-1]
    hd = D // n_head

    @pl.when(ti == 0)
    def _():
        xn = _layer_norm(x_full_ref[0], ln1_g_ref[0], ln1_b_ref[0])   # (L, D) f32
        xn_dt = xn.astype(dt)
        xn_scr[...] = xn_dt
        k_scr[...] = (jnp.dot(xn_dt, wk_ref[...],
                              preferred_element_type=jnp.float32)
                      + bk_ref[0]).astype(dt)
        v_scr[...] = (jnp.dot(xn_dt, wv_ref[...],
                              preferred_element_type=jnp.float32)
                      + bv_ref[0]).astype(dt)

    row0 = pl.multiple_of(ti * tile, tile)
    x_tile = x_full_ref[0, pl.ds(row0, tile), :].astype(jnp.float32)  # (T, D)
    xn_q = xn_scr[pl.ds(row0, tile), :]                               # (T, D) dt
    # 1/sqrt(head_dim) is folded into wq/bq on the host.
    q = (jnp.dot(xn_q, wq_ref[...], preferred_element_type=jnp.float32)
         + bq_ref[0]).astype(dt)                                      # (T, D)
    k = k_scr[...]                                                    # (L, D) dt
    v = v_scr[...]                                                    # (L, D) dt

    # Per-head softmax(QK^T)V, written into a (T, D) scratch at its static
    # column slice; the output projection is then ONE (T,D)@(D,D) matmul
    # (contraction K = D) instead of n_head matmuls with K = head_dim.
    for h in range(n_head):                # static python loop (small n_head)
        sl = slice(h * hd, (h + 1) * hd)
        s = jax.lax.dot_general(q[:, sl], k[:, sl],
                                (((1,), (1,)), ((), ())),
                                preferred_element_type=jnp.float32)   # (T, L)
        s = s - jnp.max(s, axis=-1, keepdims=True)
        p = jnp.exp(s)
        denom = jnp.sum(p, axis=-1, keepdims=True)
        if approx_recip:                   # EUP vrcp: bf16 / fast path only
            p = p * pl.reciprocal(denom, approx=True)
        else:                              # exact divide on the f32 check path
            p = p / denom
        ctx_scr[:, sl] = jnp.dot(p.astype(dt), v[:, sl],
                                 preferred_element_type=jnp.float32).astype(dt)

    attn = jnp.dot(ctx_scr[...], wo_ref[...],
                   preferred_element_type=jnp.float32) + bo_ref[0]    # (T, D) f32
    return x_tile + attn


def _mlp_residual(x_f32,
                  ln2_g_ref, ln2_b_ref,
                  fc_w_ref, fc_b_ref, proj_w_ref, proj_b_ref):
    """Returns x + c_proj(QuickGELU(c_fc(ln_2(x)))) in f32 for a (T, D) slab."""
    dt = fc_w_ref.dtype
    xn = _layer_norm(x_f32, ln2_g_ref[0], ln2_b_ref[0])               # f32
    h = jnp.dot(xn.astype(dt), fc_w_ref[...],
                preferred_element_type=jnp.float32) + fc_b_ref[0]     # (T, 4D) f32
    h = _quick_gelu(h)
    y = jnp.dot(h.astype(dt), proj_w_ref[...],
                preferred_element_type=jnp.float32) + proj_b_ref[0]   # (T, D) f32
    return x_f32 + y


# ----------------------------------- kernels -----------------------------------

def _fused_block_kernel(n_head, approx_recip, tile,
                        x_full_ref,
                        ln1_g_ref, ln1_b_ref,
                        wq_ref, bq_ref, wk_ref, bk_ref, wv_ref, bv_ref,
                        wo_ref, bo_ref,
                        ln2_g_ref, ln2_b_ref,
                        fc_w_ref, fc_b_ref, proj_w_ref, proj_b_ref,
                        o_ref,
                        xn_scr, k_scr, v_scr, ctx_scr):
    """One full residual block (attention + MLP) for a (batch, row-tile)."""
    x1 = _attn_residual(n_head, approx_recip, tile, x_full_ref,
                        ln1_g_ref, ln1_b_ref,
                        wq_ref, bq_ref, wk_ref, bk_ref, wv_ref, bv_ref,
                        wo_ref, bo_ref,
                        xn_scr, k_scr, v_scr, ctx_scr)
    out = _mlp_residual(x1, ln2_g_ref, ln2_b_ref,
                        fc_w_ref, fc_b_ref, proj_w_ref, proj_b_ref)
    o_ref[0] = out.astype(o_ref.dtype)


def _attn_block_kernel(n_head, approx_recip, tile,
                       x_full_ref,
                       ln1_g_ref, ln1_b_ref,
                       wq_ref, bq_ref, wk_ref, bk_ref, wv_ref, bv_ref,
                       wo_ref, bo_ref,
                       o_ref,
                       xn_scr, k_scr, v_scr, ctx_scr):
    """x + MHA(ln_1(x)) only (split path, small-VMEM devices)."""
    x1 = _attn_residual(n_head, approx_recip, tile, x_full_ref,
                        ln1_g_ref, ln1_b_ref,
                        wq_ref, bq_ref, wk_ref, bk_ref, wv_ref, bv_ref,
                        wo_ref, bo_ref,
                        xn_scr, k_scr, v_scr, ctx_scr)
    o_ref[0] = x1.astype(o_ref.dtype)


def _mlp_block_kernel(x_ref,
                      ln2_g_ref, ln2_b_ref,
                      fc_w_ref, fc_b_ref, proj_w_ref, proj_b_ref,
                      o_ref):
    """x + MLP(ln_2(x)) only (split path)."""
    out = _mlp_residual(x_ref[0].astype(jnp.float32),
                        ln2_g_ref, ln2_b_ref,
                        fc_w_ref, fc_b_ref, proj_w_ref, proj_b_ref)
    o_ref[0] = out.astype(o_ref.dtype)


# ----------------------------- host-side helpers ------------------------------

def _device_vmem_bytes():
    """Physical VMEM capacity of the attached TPU (fallbacks if query fails)."""
    try:
        return int(pltpu.get_tpu_info().vmem_capacity_bytes)
    except Exception:
        pass
    try:
        kind = jax.devices()[0].device_kind.lower()
        if "v7" in kind:
            return 64 << 20
    except Exception:
        pass
    return 128 << 20                       # v5e / v6e


def _vmem_limit(working_set_bytes):
    """Scoped VMEM limit: big enough for the working set, never above device."""
    cap = _device_vmem_bytes()
    want = int(working_set_bytes) + (4 << 20)
    return int(min(cap - (8 << 20), max(32 << 20, want)))


def _const_spec(shape, single_buffer=False):
    """Full-array block whose index never changes across the (b, t) grid."""
    nd = len(shape)
    index_map = lambda b, t, _nd=nd: (0,) * _nd
    if single_buffer:
        # Grid-invariant weights do not need double buffering (v7x VMEM saver).
        try:
            return pl.BlockSpec(shape, index_map, pipeline_mode=pl.Buffered(1))
        except Exception:
            pass
    return pl.BlockSpec(shape, index_map)


def _default_tile(L):
    # Amortize the ~0.35us/grid-step overhead and fill the MXU M dimension:
    # 256-512 row tiles for long sequences, otherwise the whole sequence.
    if L > 512:
        for t in (512, 384, 256, 128):
            if L % t == 0:
                return t
    return L


def _resolve_tile(L, tile):
    t = _default_tile(L) if tile is None else min(int(tile), L)
    # Avoid padded blocks (padded rows would run LN/softmax on garbage) and
    # keep the sublane dim (8,128)-legal.
    if t != L and (L % t != 0 or t % 8 != 0):
        t = L
    return t


def _auto_fuse(D, matmul_dtype):
    """Fuse attn+MLP into one call when double-buffered per-layer weights fit."""
    w_bytes = 12 * D * D * jnp.dtype(matmul_dtype).itemsize
    return 2 * w_bytes + (16 << 20) < _device_vmem_bytes()


def _attn_scratch(L, D, tile, mm_dt):
    return [
        pltpu.VMEM((L, D), mm_dt),     # ln_1(x), whole sequence
        pltpu.VMEM((L, D), mm_dt),     # K
        pltpu.VMEM((L, D), mm_dt),     # V
        pltpu.VMEM((tile, D), mm_dt),  # per-head contexts (concat layout)
    ]


def prepare_params(p, n_head, matmul_dtype=jnp.bfloat16):
    """Host-side, ONE-TIME weight prep (hoist out of the forward!): transpose
    to (in, out) layout, split the fused QKV projection, fold 1/sqrt(head_dim)
    into the Q weight/bias, cast the big matmul operands to `matmul_dtype`
    (bf16 default: MXU fast path, half the VMEM).  LN params / biases stay f32.
    """
    D = p["out_w"].shape[0]
    assert D % n_head == 0
    hd = D // n_head
    scale = 1.0 / (hd ** 0.5)

    in_w = p["in_w"]                       # (3D, D) torch in_proj_weight [q;k;v]
    in_b = p["in_b"]                       # (1, 3D)
    wq_t = (in_w[0:D, :].T * scale).astype(matmul_dtype)        # (D, D)
    wk_t = in_w[D:2 * D, :].T.astype(matmul_dtype)              # (D, D)
    wv_t = in_w[2 * D:3 * D, :].T.astype(matmul_dtype)          # (D, D)
    bq = (in_b[:, 0:D] * scale).astype(jnp.float32)             # (1, D)
    bk = in_b[:, D:2 * D].astype(jnp.float32)
    bv = in_b[:, 2 * D:3 * D].astype(jnp.float32)

    return {
        "ln1_g": p["ln1_g"], "ln1_b": p["ln1_b"],
        "wq_t": wq_t, "bq": bq, "wk_t": wk_t, "bk": bk, "wv_t": wv_t, "bv": bv,
        "wo_t": p["out_w"].T.astype(matmul_dtype), "bo": p["out_b"],
        "ln2_g": p["ln2_g"], "ln2_b": p["ln2_b"],
        "fc_w_t": p["fc_w"].T.astype(matmul_dtype), "fc_b": p["fc_b"],
        "proj_w_t": p["proj_w"].T.astype(matmul_dtype), "proj_b": p["proj_b"],
    }


# ----------------------------- pallas_call wrappers ----------------------------

def residual_block_fused_pallas(x_nld, kp, n_head, tile=None,
                                single_buffer_weights=False):
    """Full residual block in ONE pallas_call.  Grid = (batch, row tiles).
    Removes one HBM round trip of the (N,L,D) activations per layer."""
    N, L, D = x_nld.shape
    t = _resolve_tile(L, tile)
    n_t = pl.cdiv(L, t)
    mm_dt = jnp.dtype(kp["wq_t"].dtype)
    approx = mm_dt != jnp.dtype(jnp.float32)

    weights = (kp["ln1_g"], kp["ln1_b"],
               kp["wq_t"], kp["bq"], kp["wk_t"], kp["bk"], kp["wv_t"], kp["bv"],
               kp["wo_t"], kp["bo"],
               kp["ln2_g"], kp["ln2_b"],
               kp["fc_w_t"], kp["fc_b"], kp["proj_w_t"], kp["proj_b"])

    in_specs = [pl.BlockSpec((1, L, D), lambda b, tt: (b, 0, 0))]
    in_specs += [_const_spec(w.shape, single_buffer_weights) for w in weights]

    itm = jnp.dtype(x_nld.dtype).itemsize
    w_bytes = sum(int(w.size) * jnp.dtype(w.dtype).itemsize for w in weights)
    working = 2 * (w_bytes + L * D * itm + t * D * itm) \
        + (3 * L + t) * D * mm_dt.itemsize

    # NOTE(v7x): the row-tile axis is "arbitrary" because it reuses the
    # per-batch K/V scratch; with N == 1 one TensorCore idles on v7x.
    return pl.pallas_call(
        functools.partial(_fused_block_kernel, n_head, approx, t),
        out_shape=jax.ShapeDtypeStruct((N, L, D), x_nld.dtype),
        grid=(N, n_t),
        in_specs=in_specs,
        out_specs=pl.BlockSpec((1, t, D), lambda b, tt: (b, tt, 0)),
        scratch_shapes=_attn_scratch(L, D, t, mm_dt),
        compiler_params=pltpu.CompilerParams(
            dimension_semantics=("parallel", "arbitrary"),
            vmem_limit_bytes=_vmem_limit(working)),
    )(x_nld, *weights)


def attention_block_pallas(x_nld, kp, n_head, tile=None,
                           single_buffer_weights=False):
    """x + MHA(ln_1(x)) (split path).  Grid = (batch, query tiles)."""
    N, L, D = x_nld.shape
    t = _resolve_tile(L, tile)
    n_t = pl.cdiv(L, t)
    mm_dt = jnp.dtype(kp["wq_t"].dtype)
    approx = mm_dt != jnp.dtype(jnp.float32)

    weights = (kp["ln1_g"], kp["ln1_b"],
               kp["wq_t"], kp["bq"], kp["wk_t"], kp["bk"], kp["wv_t"], kp["bv"],
               kp["wo_t"], kp["bo"])

    in_specs = [pl.BlockSpec((1, L, D), lambda b, tt: (b, 0, 0))]
    in_specs += [_const_spec(w.shape, single_buffer_weights) for w in weights]

    itm = jnp.dtype(x_nld.dtype).itemsize
    w_bytes = sum(int(w.size) * jnp.dtype(w.dtype).itemsize for w in weights)
    working = 2 * (w_bytes + L * D * itm + t * D * itm) \
        + (3 * L + t) * D * mm_dt.itemsize

    return pl.pallas_call(
        functools.partial(_attn_block_kernel, n_head, approx, t),
        out_shape=jax.ShapeDtypeStruct((N, L, D), x_nld.dtype),
        grid=(N, n_t),
        in_specs=in_specs,
        out_specs=pl.BlockSpec((1, t, D), lambda b, tt: (b, tt, 0)),
        scratch_shapes=_attn_scratch(L, D, t, mm_dt),
        compiler_params=pltpu.CompilerParams(
            dimension_semantics=("parallel", "arbitrary"),
            vmem_limit_bytes=_vmem_limit(working)),
    )(x_nld, *weights)


def mlp_block_pallas(x_nld, kp, tile=None, single_buffer_weights=False):
    """x + MLP(ln_2(x)) (split path).  Grid = (batch, row tiles), all parallel."""
    N, L, D = x_nld.shape
    t = _resolve_tile(L, tile)
    n_t = pl.cdiv(L, t)

    weights = (kp["ln2_g"], kp["ln2_b"],
               kp["fc_w_t"], kp["fc_b"], kp["proj_w_t"], kp["proj_b"])

    in_specs = [pl.BlockSpec((1, t, D), lambda b, tt: (b, tt, 0))]
    in_specs += [_const_spec(w.shape, single_buffer_weights) for w in weights]

    itm = jnp.dtype(x_nld.dtype).itemsize
    w_bytes = sum(int(w.size) * jnp.dtype(w.dtype).itemsize for w in weights)
    working = 2 * (w_bytes + 2 * t * D * itm)

    return pl.pallas_call(
        _mlp_block_kernel,
        out_shape=jax.ShapeDtypeStruct((N, L, D), x_nld.dtype),
        grid=(N, n_t),
        in_specs=in_specs,
        out_specs=pl.BlockSpec((1, t, D), lambda b, tt: (b, tt, 0)),
        compiler_params=pltpu.CompilerParams(
            dimension_semantics=("parallel", "parallel"),
            vmem_limit_bytes=_vmem_limit(working)),
    )(x_nld, *weights)


def transformer_forward(x_lnd, prepared_layers, n_head, *,
                        seq_tile=None, fuse=None, single_buffer_weights=False):
    """Matches Transformer.forward: x is (L, N, D), sequential resblocks.
    `prepared_layers` come from prepare_params (called ONCE at weight-load
    time, NOT per forward)."""
    x = jnp.transpose(x_lnd, (1, 0, 2))          # (L,N,D) -> (N,L,D), once
    for kp in prepared_layers:
        D = kp["wq_t"].shape[0]
        do_fuse = _auto_fuse(D, kp["wq_t"].dtype) if fuse is None else fuse
        if do_fuse:
            x = residual_block_fused_pallas(
                x, kp, n_head, tile=seq_tile,
                single_buffer_weights=single_buffer_weights)
        else:
            # v7x-friendly split: each call keeps only its own weights resident.
            x = attention_block_pallas(
                x, kp, n_head, tile=seq_tile,
                single_buffer_weights=single_buffer_weights)
            x = mlp_block_pallas(
                x, kp, tile=seq_tile,
                single_buffer_weights=single_buffer_weights)
    return jnp.transpose(x, (1, 0, 2))           # back to (L, N, D), once


# ----------------------------- pure-JAX reference -----------------------------

def _ref_block_single(x, p, n_head):
    D = x.shape[-1]
    hd = D // n_head
    scale = 1.0 / (hd ** 0.5)

    xn = _layer_norm(x, p["ln1_g"][0], p["ln1_b"][0])
    qkv = xn @ p["in_w"].T + p["in_b"][0]
    q, k, v = qkv[:, :D], qkv[:, D:2 * D], qkv[:, 2 * D:]
    outs = []
    for h in range(n_head):
        qh = q[:, h * hd:(h + 1) * hd] * scale
        kh = k[:, h * hd:(h + 1) * hd]
        vh = v[:, h * hd:(h + 1) * hd]
        s = qh @ kh.T
        p_attn = jax.nn.softmax(s, axis=-1)
        outs.append(p_attn @ vh)
    attn = jnp.concatenate(outs, axis=-1) @ p["out_w"].T + p["out_b"][0]
    x = x + attn
    xn2 = _layer_norm(x, p["ln2_g"][0], p["ln2_b"][0])
    h1 = _quick_gelu(xn2 @ p["fc_w"].T + p["fc_b"][0])
    return x + h1 @ p["proj_w"].T + p["proj_b"][0]


def transformer_ref(x_lnd, layer_params, n_head):
    x = jnp.transpose(x_lnd, (1, 0, 2))
    for p in layer_params:
        x = jax.vmap(lambda xb, _p=p: _ref_block_single(xb, _p, n_head))(x)
    return jnp.transpose(x, (1, 0, 2))


# ----------------------------- parameter init ---------------------------------

def init_params(key, width, layers):
    """Parameters in native torch layout (prepare_params converts once)."""
    D = width
    params = []
    for _ in range(layers):
        key, *ks = jax.random.split(key, 5)
        params.append({
            "ln1_g": jnp.ones((1, D), jnp.float32),
            "ln1_b": jnp.zeros((1, D), jnp.float32),
            "in_w": 0.02 * jax.random.normal(ks[0], (3 * D, D), jnp.float32),
            "in_b": jnp.zeros((1, 3 * D), jnp.float32),
            "out_w": 0.02 * jax.random.normal(ks[1], (D, D), jnp.float32),
            "out_b": jnp.zeros((1, D), jnp.float32),
            "ln2_g": jnp.ones((1, D), jnp.float32),
            "ln2_b": jnp.zeros((1, D), jnp.float32),
            "fc_w": 0.02 * jax.random.normal(ks[2], (4 * D, D), jnp.float32),
            "fc_b": jnp.zeros((1, 4 * D), jnp.float32),
            "proj_w": 0.02 * jax.random.normal(ks[3], (D, 4 * D), jnp.float32),
            "proj_b": jnp.zeros((1, D), jnp.float32),
        })
    return params


# ----------------------------------- main --------------------------------------

if __name__ == "__main__":
    L, N, D, H, LAYERS = 16, 2, 32, 4, 2   # seq, batch, width, heads, layers

    key = jax.random.PRNGKey(0)
    k_x, k_p = jax.random.split(key)
    x = jax.random.normal(k_x, (L, N, D), jnp.float32)   # PyTorch layout (L, N, D)
    layer_params = init_params(k_p, D, LAYERS)

    ref = jax.block_until_ready(transformer_ref(x, layer_params, H))

    # Weight prep is hoisted: done ONCE here, outside the forward.
    prep_f32 = [prepare_params(p, H, jnp.float32) for p in layer_params]
    prep_bf16 = [prepare_params(p, H, jnp.bfloat16) for p in layer_params]

    # 1) f32, fused block, tiled over the sequence: exercises the per-batch
    #    K/V scratch reuse across query tiles.  Exact softmax -> tight check.
    out_f32 = jax.block_until_ready(
        transformer_forward(x, prep_f32, H, seq_tile=8, fuse=True))
    assert out_f32.shape == (L, N, D)
    assert jnp.allclose(out_f32, ref, rtol=1e-3, atol=1e-3), \
        "f32 fused kernel mismatch vs pure-JAX reference"

    # 2) f32, split attention/MLP calls (the small-VMEM / v7x path).
    out_split = jax.block_until_ready(
        transformer_forward(x, prep_f32, H, fuse=False))
    assert jnp.allclose(out_split, ref, rtol=1e-3, atol=1e-3), \
        "f32 split kernel mismatch vs pure-JAX reference"

    # 3) bf16 matmul operands (MXU fast path), fuse/split auto-chosen by VMEM.
    out_bf16 = jax.block_until_ready(
        transformer_forward(x, prep_bf16, H))
    assert jnp.allclose(out_bf16, ref, rtol=5e-2, atol=5e-2), \
        "bf16 kernel mismatch vs pure-JAX reference"

    print("KERNEL_OK")
</pallas_src>

<mosaic_0001>
module attributes {stable_mosaic.version = 11 : i64} {
  func.func @_fused_block_kernel(%arg0: i32, %arg1: i32, %arg2: memref<1x16x32xf32, #tpu.memory_space<vmem>>, %arg3: memref<1x32xf32, #tpu.memory_space<vmem>>, %arg4: memref<1x32xf32, #tpu.memory_space<vmem>>, %arg5: memref<32x32xf32, #tpu.memory_space<vmem>>, %arg6: memref<1x32xf32, #tpu.memory_space<vmem>>, %arg7: memref<32x32xf32, #tpu.memory_space<vmem>>, %arg8: memref<1x32xf32, #tpu.memory_space<vmem>>, %arg9: memref<32x32xf32, #tpu.memory_space<vmem>>, %arg10: memref<1x32xf32, #tpu.memory_space<vmem>>, %arg11: memref<32x32xf32, #tpu.memory_space<vmem>>, %arg12: memref<1x32xf32, #tpu.memory_space<vmem>>, %arg13: memref<1x32xf32, #tpu.memory_space<vmem>>, %arg14: memref<1x32xf32, #tpu.memory_space<vmem>>, %arg15: memref<32x128xf32, #tpu.memory_space<vmem>>, %arg16: memref<1x128xf32, #tpu.memory_space<vmem>>, %arg17: memref<128x32xf32, #tpu.memory_space<vmem>>, %arg18: memref<1x32xf32, #tpu.memory_space<vmem>>, %arg19: memref<1x8x32xf32, #tpu.memory_space<vmem>>, %arg20: memref<16x32xf32, #tpu.memory_space<vmem>>, %arg21: memref<16x32xf32, #tpu.memory_space<vmem>>, %arg22: memref<16x32xf32, #tpu.memory_space<vmem>>, %arg23: memref<8x32xf32, #tpu.memory_space<vmem>>) attributes {dimension_semantics = [#tpu.dimension_semantics<parallel>, #tpu.dimension_semantics<arbitrary>], iteration_bounds = array<i64: 2, 2>, scalar_prefetch = 0 : i64, scratch_operands = 4 : i64, tpu.core_type = #tpu.core_type<tc>, window_params = [{transform_indices = @transform_0, window_bounds = array<i64: 1, 16, 32>}, {pipeline_mode = #tpu.pipeline_mode<synchronous>, transform_indices = @transform_1, window_bounds = array<i64: 1, 32>}, {pipeline_mode = #tpu.pipeline_mode<synchronous>, transform_indices = @transform_2, window_bounds = array<i64: 1, 32>}, {pipeline_mode = #tpu.pipeline_mode<synchronous>, transform_indices = @transform_3, window_bounds = array<i64: 32, 32>}, {pipeline_mode = #tpu.pipeline_mode<synchronous>, transform_indices = @transform_4, window_bounds = array<i64: 1, 32>}, {pipeline_mode = #tpu.pipeline_mode<synchronous>, transform_indices = @transform_5, window_bounds = array<i64: 32, 32>}, {pipeline_mode = #tpu.pipeline_mode<synchronous>, transform_indices = @transform_6, window_bounds = array<i64: 1, 32>}, {pipeline_mode = #tpu.pipeline_mode<synchronous>, transform_indices = @transform_7, window_bounds = array<i64: 32, 32>}, {pipeline_mode = #tpu.pipeline_mode<synchronous>, transform_indices = @transform_8, window_bounds = array<i64: 1, 32>}, {pipeline_mode = #tpu.pipeline_mode<synchronous>, transform_indices = @transform_9, window_bounds = array<i64: 32, 32>}, {pipeline_mode = #tpu.pipeline_mode<synchronous>, transform_indices = @transform_10, window_bounds = array<i64: 1, 32>}, {pipeline_mode = #tpu.pipeline_mode<synchronous>, transform_indices = @transform_11, window_bounds = array<i64: 1, 32>}, {pipeline_mode = #tpu.pipeline_mode<synchronous>, transform_indices = @transform_12, window_bounds = array<i64: 1, 32>}, {pipeline_mode = #tpu.pipeline_mode<synchronous>, transform_indices = @transform_13, window_bounds = array<i64: 32, 128>}, {pipeline_mode = #tpu.pipeline_mode<synchronous>, transform_indices = @transform_14, window_bounds = array<i64: 1, 128>}, {pipeline_mode = #tpu.pipeline_mode<synchronous>, transform_indices = @transform_15, window_bounds = array<i64: 128, 32>}, {pipeline_mode = #tpu.pipeline_mode<synchronous>, transform_indices = @transform_16, window_bounds = array<i64: 1, 32>}, {transform_indices = @transform_17, window_bounds = array<i64: 1, 8, 32>}]} {
    %c0_i32 = arith.constant 0 : i32
    %0 = arith.cmpi eq, %arg1, %c0_i32 : i32
    %1 = arith.extui %0 : i1 to i32
    %c0_i32_0 = arith.constant 0 : i32
    %2 = arith.cmpi ne, %1, %c0_i32_0 : i32
    scf.if %2 {
      %c0_63 = arith.constant 0 : index
      %c0_64 = arith.constant 0 : index
      %c0_65 = arith.constant 0 : index
      %142 = vector.load %arg2[%c0_63, %c0_64, %c0_65] : memref<1x16x32xf32, #tpu.memory_space<vmem>>, vector<1x16x32xf32>
      %143 = vector.shape_cast %142 : vector<1x16x32xf32> to vector<16x32xf32>
      %c0_66 = arith.constant 0 : index
      %c0_67 = arith.constant 0 : index
      %144 = vector.load %arg3[%c0_66, %c0_67] : memref<1x32xf32, #tpu.memory_space<vmem>>, vector<1x32xf32>
      %145 = vector.shape_cast %144 : vector<1x32xf32> to vector<32xf32>
      %c0_68 = arith.constant 0 : index
      %c0_69 = arith.constant 0 : index
      %146 = vector.load %arg4[%c0_68, %c0_69] : memref<1x32xf32, #tpu.memory_space<vmem>>, vector<1x32xf32>
      %147 = vector.shape_cast %146 : vector<1x32xf32> to vector<32xf32>
      %cst_70 = arith.constant dense<0.000000e+00> : vector<16xf32>
      %148 = vector.multi_reduction <add>, %143, %cst_70 [1] : vector<16x32xf32> to vector<16xf32>
      %149 = vector.shape_cast %148 : vector<16xf32> to vector<16x1xf32>
      %cst_71 = arith.constant 3.200000e+01 : f32
      %150 = vector.broadcast %cst_71 : f32 to vector<16x1xf32>
      %151 = arith.divf %149, %150 : vector<16x1xf32>
      %152 = vector.broadcast %151 : vector<16x1xf32> to vector<16x32xf32>
      %153 = arith.subf %143, %152 : vector<16x32xf32>
      %154 = arith.mulf %153, %153 : vector<16x32xf32>
      %cst_72 = arith.constant dense<0.000000e+00> : vector<16xf32>
      %155 = vector.multi_reduction <add>, %154, %cst_72 [1] : vector<16x32xf32> to vector<16xf32>
      %156 = vector.shape_cast %155 : vector<16xf32> to vector<16x1xf32>
      %cst_73 = arith.constant 3.200000e+01 : f32
      %157 = vector.broadcast %cst_73 : f32 to vector<16x1xf32>
      %158 = arith.divf %156, %157 : vector<16x1xf32>
      %159 = vector.broadcast %151 : vector<16x1xf32> to vector<16x32xf32>
      %160 = arith.subf %143, %159 : vector<16x32xf32>
      %cst_74 = arith.constant 9.99999974E-6 : f32
      %161 = vector.broadcast %cst_74 : f32 to vector<16x1xf32>
      %162 = arith.addf %158, %161 : vector<16x1xf32>
      %163 = math.rsqrt %162 : vector<16x1xf32>
      %164 = vector.broadcast %163 : vector<16x1xf32> to vector<16x32xf32>
      %165 = arith.mulf %160, %164 : vector<16x32xf32>
      %166 = vector.shape_cast %145 : vector<32xf32> to vector<1x32xf32>
      %167 = vector.broadcast %166 : vector<1x32xf32> to vector<16x32xf32>
      %168 = arith.mulf %165, %167 : vector<16x32xf32>
      %169 = vector.shape_cast %147 : vector<32xf32> to vector<1x32xf32>
      %170 = vector.broadcast %169 : vector<1x32xf32> to vector<16x32xf32>
      %171 = arith.addf %168, %170 : vector<16x32xf32>
      %c0_75 = arith.constant 0 : index
      %c0_76 = arith.constant 0 : index
      %172 = vector.load %arg20[%c0_75, %c0_76] : memref<16x32xf32, #tpu.memory_space<vmem>>, vector<16x32xf32>
      tpu.vector_store %arg20[%c0_75, %c0_76], %171 {strides = array<i32>} : memref<16x32xf32, #tpu.memory_space<vmem>>, vector<16x32xf32>,
      %c0_77 = arith.constant 0 : index
      %c0_78 = arith.constant 0 : index
      %173 = vector.load %arg7[%c0_77, %c0_78] : memref<32x32xf32, #tpu.memory_space<vmem>>, vector<32x32xf32>
      %cst_79 = arith.constant dense<0.000000e+00> : vector<16x32xf32>
      %174 = tpu.matmul %171, %173, %cst_79 {dimension_numbers = #tpu.dot_dimension_numbers<[1], [0], [0], [1], [0, 0, 1, 1], [], []>} : vector<16x32xf32>, vector<32x32xf32>, vector<16x32xf32> -> vector<16x32xf32>
      %c0_80 = arith.constant 0 : index
      %c0_81 = arith.constant 0 : index
      %175 = vector.load %arg8[%c0_80, %c0_81] : memref<1x32xf32, #tpu.memory_space<vmem>>, vector<1x32xf32>
      %176 = vector.shape_cast %175 : vector<1x32xf32> to vector<32xf32>
      %177 = vector.shape_cast %176 : vector<32xf32> to vector<1x32xf32>
      %178 = vector.broadcast %177 : vector<1x32xf32> to vector<16x32xf32>
      %179 = arith.addf %174, %178 : vector<16x32xf32>
      %c0_82 = arith.constant 0 : index
      %c0_83 = arith.constant 0 : index
      %180 = vector.load %arg21[%c0_82, %c0_83] : memref<16x32xf32, #tpu.memory_space<vmem>>, vector<16x32xf32>
      tpu.vector_store %arg21[%c0_82, %c0_83], %179 {strides = array<i32>} : memref<16x32xf32, #tpu.memory_space<vmem>>, vector<16x32xf32>,
      %c0_84 = arith.constant 0 : index
      %c0_85 = arith.constant 0 : index
      %181 = vector.load %arg9[%c0_84, %c0_85] : memref<32x32xf32, #tpu.memory_space<vmem>>, vector<32x32xf32>
      %cst_86 = arith.constant dense<0.000000e+00> : vector<16x32xf32>
      %182 = tpu.matmul %171, %181, %cst_86 {dimension_numbers = #tpu.dot_dimension_numbers<[1], [0], [0], [1], [0, 0, 1, 1], [], []>} : vector<16x32xf32>, vector<32x32xf32>, vector<16x32xf32> -> vector<16x32xf32>
      %c0_87 = arith.constant 0 : index
      %c0_88 = arith.constant 0 : index
      %183 = vector.load %arg10[%c0_87, %c0_88] : memref<1x32xf32, #tpu.memory_space<vmem>>, vector<1x32xf32>
      %184 = vector.shape_cast %183 : vector<1x32xf32> to vector<32xf32>
      %185 = vector.shape_cast %184 : vector<32xf32> to vector<1x32xf32>
      %186 = vector.broadcast %185 : vector<1x32xf32> to vector<16x32xf32>
      %187 = arith.addf %182, %186 : vector<16x32xf32>
      %c0_89 = arith.constant 0 : index
      %c0_90 = arith.constant 0 : index
      %188 = vector.load %arg22[%c0_89, %c0_90] : memref<16x32xf32, #tpu.memory_space<vmem>>, vector<16x32xf32>
      tpu.vector_store %arg22[%c0_89, %c0_90], %187 {strides = array<i32>} : memref<16x32xf32, #tpu.memory_space<vmem>>, vector<16x32xf32>,
    } else {
    }
    %c8_i32 = arith.constant 8 : i32
    %3 = arith.muli %arg1, %c8_i32 : i32
    %4 = tpu.assume_multiple %3, 8 : i32
    %c0 = arith.constant 0 : index
    %5 = arith.index_cast %4 : i32 to index
    %c0_1 = arith.constant 0 : index
    %6 = vector.load %arg2[%c0, %5, %c0_1] : memref<1x16x32xf32, #tpu.memory_space<vmem>>, vector<1x8x32xf32>
    %7 = vector.shape_cast %6 : vector<1x8x32xf32> to vector<8x32xf32>
    %8 = arith.index_cast %4 : i32 to index
    %c0_2 = arith.constant 0 : index
    %9 = vector.load %arg20[%8, %c0_2] : memref<16x32xf32, #tpu.memory_space<vmem>>, vector<8x32xf32>
    %c0_3 = arith.constant 0 : index
    %c0_4 = arith.constant 0 : index
    %10 = vector.load %arg5[%c0_3, %c0_4] : memref<32x32xf32, #tpu.memory_space<vmem>>, vector<32x32xf32>
    %cst = arith.constant dense<0.000000e+00> : vector<8x32xf32>
    %11 = tpu.matmul %9, %10, %cst {dimension_numbers = #tpu.dot_dimension_numbers<[1], [0], [0], [1], [0, 0, 1, 1], [], []>} : vector<8x32xf32>, vector<32x32xf32>, vector<8x32xf32> -> vector<8x32xf32>
    %c0_5 = arith.constant 0 : index
    %c0_6 = arith.constant 0 : index
    %12 = vector.load %arg6[%c0_5, %c0_6] : memref<1x32xf32, #tpu.memory_space<vmem>>, vector<1x32xf32>
    %13 = vector.shape_cast %12 : vector<1x32xf32> to vector<32xf32>
    %14 = vector.shape_cast %13 : vector<32xf32> to vector<1x32xf32>
    %15 = vector.broadcast %14 : vector<1x32xf32> to vector<8x32xf32>
    %16 = arith.addf %11, %15 : vector<8x32xf32>
    %c0_7 = arith.constant 0 : index
    %c0_8 = arith.constant 0 : index
    %17 = vector.load %arg21[%c0_7, %c0_8] : memref<16x32xf32, #tpu.memory_space<vmem>>, vector<16x32xf32>
    %c0_9 = arith.constant 0 : index
    %c0_10 = arith.constant 0 : index
    %18 = vector.load %arg22[%c0_9, %c0_10] : memref<16x32xf32, #tpu.memory_space<vmem>>, vector<16x32xf32>
    %19 = vector.extract_strided_slice %16 {offsets = [0, 0], sizes = [8, 8], strides = [1, 1]} : vector<8x32xf32> to vector<8x8xf32>
    %20 = vector.extract_strided_slice %17 {offsets = [0, 0], sizes = [16, 8], strides = [1, 1]} : vector<16x32xf32> to vector<16x8xf32>
    %cst_11 = arith.constant dense<0.000000e+00> : vector<8x16xf32>
    %21 = tpu.matmul %19, %20, %cst_11 {dimension_numbers = #tpu.dot_dimension_numbers<[1], [1], [0], [0], [0, 0, 1, 0], [], []>} : vector<8x8xf32>, vector<16x8xf32>, vector<8x16xf32> -> vector<8x16xf32>
    %cst_12 = arith.constant dense<0xFF800000> : vector<8xf32>
    %22 = vector.multi_reduction <maximumf>, %21, %cst_12 [1] : vector<8x16xf32> to vector<8xf32>
    %23 = vector.shape_cast %22 : vector<8xf32> to vector<8x1xf32>
    %24 = vector.broadcast %23 : vector<8x1xf32> to vector<8x16xf32>
    %25 = arith.subf %21, %24 : vector<8x16xf32>
    %26 = math.exp %25 : vector<8x16xf32>
    %cst_13 = arith.constant dense<0.000000e+00> : vector<8xf32>
    %27 = vector.multi_reduction <add>, %26, %cst_13 [1] : vector<8x16xf32> to vector<8xf32>
    %28 = vector.shape_cast %27 : vector<8xf32> to vector<8x1xf32>
    %29 = vector.broadcast %28 : vector<8x1xf32> to vector<8x16xf32>
    %30 = arith.divf %26, %29 : vector<8x16xf32>
    %31 = vector.extract_strided_slice %18 {offsets = [0, 0], sizes = [16, 8], strides = [1, 1]} : vector<16x32xf32> to vector<16x8xf32>
    %cst_14 = arith.constant dense<0.000000e+00> : vector<8x8xf32>
    %32 = tpu.matmul %30, %31, %cst_14 {dimension_numbers = #tpu.dot_dimension_numbers<[1], [0], [0], [1], [0, 0, 1, 1], [], []>} : vector<8x16xf32>, vector<16x8xf32>, vector<8x8xf32> -> vector<8x8xf32>
    %c0_15 = arith.constant 0 : index
    %c0_16 = arith.constant 0 : index
    %33 = vector.load %arg23[%c0_15, %c0_16] : memref<8x32xf32, #tpu.memory_space<vmem>>, vector<8x8xf32>
    tpu.vector_store %arg23[%c0_15, %c0_16], %32 {strides = array<i32>} : memref<8x32xf32, #tpu.memory_space<vmem>>, vector<8x8xf32>,
    %34 = vector.extract_strided_slice %16 {offsets = [0, 8], sizes = [8, 8], strides = [1, 1]} : vector<8x32xf32> to vector<8x8xf32>
    %35 = vector.extract_strided_slice %17 {offsets = [0, 8], sizes = [16, 8], strides = [1, 1]} : vector<16x32xf32> to vector<16x8xf32>
    %cst_17 = arith.constant dense<0.000000e+00> : vector<8x16xf32>
    %36 = tpu.matmul %34, %35, %cst_17 {dimension_numbers = #tpu.dot_dimension_numbers<[1], [1], [0], [0], [0, 0, 1, 0], [], []>} : vector<8x8xf32>, vector<16x8xf32>, vector<8x16xf32> -> vector<8x16xf32>
    %cst_18 = arith.constant dense<0xFF800000> : vector<8xf32>
    %37 = vector.multi_reduction <maximumf>, %36, %cst_18 [1] : vector<8x16xf32> to vector<8xf32>
    %38 = vector.shape_cast %37 : vector<8xf32> to vector<8x1xf32>
    %39 = vector.broadcast %38 : vector<8x1xf32> to vector<8x16xf32>
    %40 = arith.subf %36, %39 : vector<8x16xf32>
    %41 = math.exp %40 : vector<8x16xf32>
    %cst_19 = arith.constant dense<0.000000e+00> : vector<8xf32>
    %42 = vector.multi_reduction <add>, %41, %cst_19 [1] : vector<8x16xf32> to vector<8xf32>
    %43 = vector.shape_cast %42 : vector<8xf32> to vector<8x1xf32>
    %44 = vector.broadcast %43 : vector<8x1xf32> to vector<8x16xf32>
    %45 = arith.divf %41, %44 : vector<8x16xf32>
    %46 = vector.extract_strided_slice %18 {offsets = [0, 8], sizes = [16, 8], strides = [1, 1]} : vector<16x32xf32> to vector<16x8xf32>
    %cst_20 = arith.constant dense<0.000000e+00> : vector<8x8xf32>
    %47 = tpu.matmul %45, %46, %cst_20 {dimension_numbers = #tpu.dot_dimension_numbers<[1], [0], [0], [1], [0, 0, 1, 1], [], []>} : vector<8x16xf32>, vector<16x8xf32>, vector<8x8xf32> -> vector<8x8xf32>
    %c0_21 = arith.constant 0 : index
    %c8 = arith.constant 8 : index
    %48 = vector.load %arg23[%c0_21, %c8] : memref<8x32xf32, #tpu.memory_space<vmem>>, vector<8x8xf32>
    tpu.vector_store %arg23[%c0_21, %c8], %47 {strides = array<i32>} : memref<8x32xf32, #tpu.memory_space<vmem>>, vector<8x8xf32>,
    %49 = vector.extract_strided_slice %16 {offsets = [0, 16], sizes = [8, 8], strides = [1, 1]} : vector<8x32xf32> to vector<8x8xf32>
    %50 = vector.extract_strided_slice %17 {offsets = [0, 16], sizes = [16, 8], strides = [1, 1]} : vector<16x32xf32> to vector<16x8xf32>
    %cst_22 = arith.constant dense<0.000000e+00> : vector<8x16xf32>
    %51 = tpu.matmul %49, %50, %cst_22 {dimension_numbers = #tpu.dot_dimension_numbers<[1], [1], [0], [0], [0, 0, 1, 0], [], []>} : vector<8x8xf32>, vector<16x8xf32>, vector<8x16xf32> -> vector<8x16xf32>
    %cst_23 = arith.constant dense<0xFF800000> : vector<8xf32>
    %52 = vector.multi_reduction <maximumf>, %51, %cst_23 [1] : vector<8x16xf32> to vector<8xf32>
    %53 = vector.shape_cast %52 : vector<8xf32> to vector<8x1xf32>
    %54 = vector.broadcast %53 : vector<8x1xf32> to vector<8x16xf32>
    %55 = arith.subf %51, %54 : vector<8x16xf32>
    %56 = math.exp %55 : vector<8x16xf32>
    %cst_24 = arith.constant dense<0.000000e+00> : vector<8xf32>
    %57 = vector.multi_reduction <add>, %56, %cst_24 [1] : vector<8x16xf32> to vector<8xf32>
    %58 = vector.shape_cast %57 : vector<8xf32> to vector<8x1xf32>
    %59 = vector.broadcast %58 : vector<8x1xf32> to vector<8x16xf32>
    %60 = arith.divf %56, %59 : vector<8x16xf32>
    %61 = vector.extract_strided_slice %18 {offsets = [0, 16], sizes = [16, 8], strides = [1, 1]} : vector<16x32xf32> to vector<16x8xf32>
    %cst_25 = arith.constant dense<0.000000e+00> : vector<8x8xf32>
    %62 = tpu.matmul %60, %61, %cst_25 {dimension_numbers = #tpu.dot_dimension_numbers<[1], [0], [0], [1], [0, 0, 1, 1], [], []>} : vector<8x16xf32>, vector<16x8xf32>, vector<8x8xf32> -> vector<8x8xf32>
    %c0_26 = arith.constant 0 : index
    %c16 = arith.constant 16 : index
    %63 = vector.load %arg23[%c0_26, %c16] : memref<8x32xf32, #tpu.memory_space<vmem>>, vector<8x8xf32>
    tpu.vector_store %arg23[%c0_26, %c16], %62 {strides = array<i32>} : memref<8x32xf32, #tpu.memory_space<vmem>>, vector<8x8xf32>,
    %64 = vector.extract_strided_slice %16 {offsets = [0, 24], sizes = [8, 8], strides = [1, 1]} : vector<8x32xf32> to vector<8x8xf32>
    %65 = vector.extract_strided_slice %17 {offsets = [0, 24], sizes = [16, 8], strides = [1, 1]} : vector<16x32xf32> to vector<16x8xf32>
    %cst_27 = arith.constant dense<0.000000e+00> : vector<8x16xf32>
    %66 = tpu.matmul %64, %65, %cst_27 {dimension_numbers = #tpu.dot_dimension_numbers<[1], [1], [0], [0], [0, 0, 1, 0], [], []>} : vector<8x8xf32>, vector<16x8xf32>, vector<8x16xf32> -> vector<8x16xf32>
    %cst_28 = arith.constant dense<0xFF800000> : vector<8xf32>
    %67 = vector.multi_reduction <maximumf>, %66, %cst_28 [1] : vector<8x16xf32> to vector<8xf32>
    %68 = vector.shape_cast %67 : vector<8xf32> to vector<8x1xf32>
    %69 = vector.broadcast %68 : vector<8x1xf32> to vector<8x16xf32>
    %70 = arith.subf %66, %69 : vector<8x16xf32>
    %71 = math.exp %70 : vector<8x16xf32>
    %cst_29 = arith.constant dense<0.000000e+00> : vector<8xf32>
    %72 = vector.multi_reduction <add>, %71, %cst_29 [1] : vector<8x16xf32> to vector<8xf32>
    %73 = vector.shape_cast %72 : vector<8xf32> to vector<8x1xf32>
    %74 = vector.broadcast %73 : vector<8x1xf32> to vector<8x16xf32>
    %75 = arith.divf %71, %74 : vector<8x16xf32>
    %76 = vector.extract_strided_slice %18 {offsets = [0, 24], sizes = [16, 8], strides = [1, 1]} : vector<16x32xf32> to vector<16x8xf32>
    %cst_30 = arith.constant dense<0.000000e+00> : vector<8x8xf32>
    %77 = tpu.matmul %75, %76, %cst_30 {dimension_numbers = #tpu.dot_dimension_numbers<[1], [0], [0], [1], [0, 0, 1, 1], [], []>} : vector<8x16xf32>, vector<16x8xf32>, vector<8x8xf32> -> vector<8x8xf32>
    %c0_31 = arith.constant 0 : index
    %c24 = arith.constant 24 : index
    %78 = vector.load %arg23[%c0_31, %c24] : memref<8x32xf32, #tpu.memory_space<vmem>>, vector<8x8xf32>
    tpu.vector_store %arg23[%c0_31, %c24], %77 {strides = array<i32>} : memref<8x32xf32, #tpu.memory_space<vmem>>, vector<8x8xf32>,
    %c0_32 = arith.constant 0 : index
    %c0_33 = arith.constant 0 : index
    %79 = vector.load %arg23[%c0_32, %c0_33] : memref<8x32xf32, #tpu.memory_space<vmem>>, vector<8x32xf32>
    %c0_34 = arith.constant 0 : index
    %c0_35 = arith.constant 0 : index
    %80 = vector.load %arg11[%c0_34, %c0_35] : memref<32x32xf32, #tpu.memory_space<vmem>>, vector<32x32xf32>
    %cst_36 = arith.constant dense<0.000000e+00> : vector<8x32xf32>
    %81 = tpu.matmul %79, %80, %cst_36 {dimension_numbers = #tpu.dot_dimension_numbers<[1], [0], [0], [1], [0, 0, 1, 1], [], []>} : vector<8x32xf32>, vector<32x32xf32>, vector<8x32xf32> -> vector<8x32xf32>
    %c0_37 = arith.constant 0 : index
    %c0_38 = arith.constant 0 : index
    %82 = vector.load %arg12[%c0_37, %c0_38] : memref<1x32xf32, #tpu.memory_space<vmem>>, vector<1x32xf32>
    %83 = vector.shape_cast %82 : vector<1x32xf32> to vector<32xf32>
    %84 = vector.shape_cast %83 : vector<32xf32> to vector<1x32xf32>
    %85 = vector.broadcast %84 : vector<1x32xf32> to vector<8x32xf32>
    %86 = arith.addf %81, %85 : vector<8x32xf32>
    %87 = arith.addf %7, %86 : vector<8x32xf32>
    %c0_39 = arith.constant 0 : index
    %c0_40 = arith.constant 0 : index
    %88 = vector.load %arg13[%c0_39, %c0_40] : memref<1x32xf32, #tpu.memory_space<vmem>>, vector<1x32xf32>
    %89 = vector.shape_cast %88 : vector<1x32xf32> to vector<32xf32>
    %c0_41 = arith.constant 0 : index
    %c0_42 = arith.constant 0 : index
    %90 = vector.load %arg14[%c0_41, %c0_42] : memref<1x32xf32, #tpu.memory_space<vmem>>, vector<1x32xf32>
    %91 = vector.shape_cast %90 : vector<1x32xf32> to vector<32xf32>
    %cst_43 = arith.constant dense<0.000000e+00> : vector<8xf32>
    %92 = vector.multi_reduction <add>, %87, %cst_43 [1] : vector<8x32xf32> to vector<8xf32>
    %93 = vector.shape_cast %92 : vector<8xf32> to vector<8x1xf32>
    %cst_44 = arith.constant 3.200000e+01 : f32
    %94 = vector.broadcast %cst_44 : f32 to vector<8x1xf32>
    %95 = arith.divf %93, %94 : vector<8x1xf32>
    %96 = vector.broadcast %95 : vector<8x1xf32> to vector<8x32xf32>
    %97 = arith.subf %87, %96 : vector<8x32xf32>
    %98 = arith.mulf %97, %97 : vector<8x32xf32>
    %cst_45 = arith.constant dense<0.000000e+00> : vector<8xf32>
    %99 = vector.multi_reduction <add>, %98, %cst_45 [1] : vector<8x32xf32> to vector<8xf32>
    %100 = vector.shape_cast %99 : vector<8xf32> to vector<8x1xf32>
    %cst_46 = arith.constant 3.200000e+01 : f32
    %101 = vector.broadcast %cst_46 : f32 to vector<8x1xf32>
    %102 = arith.divf %100, %101 : vector<8x1xf32>
    %103 = vector.broadcast %95 : vector<8x1xf32> to vector<8x32xf32>
    %104 = arith.subf %87, %103 : vector<8x32xf32>
    %cst_47 = arith.constant 9.99999974E-6 : f32
    %105 = vector.broadcast %cst_47 : f32 to vector<8x1xf32>
    %106 = arith.addf %102, %105 : vector<8x1xf32>
    %107 = math.rsqrt %106 : vector<8x1xf32>
    %108 = vector.broadcast %107 : vector<8x1xf32> to vector<8x32xf32>
    %109 = arith.mulf %104, %108 : vector<8x32xf32>
    %110 = vector.shape_cast %89 : vector<32xf32> to vector<1x32xf32>
    %111 = vector.broadcast %110 : vector<1x32xf32> to vector<8x32xf32>
    %112 = arith.mulf %109, %111 : vector<8x32xf32>
    %113 = vector.shape_cast %91 : vector<32xf32> to vector<1x32xf32>
    %114 = vector.broadcast %113 : vector<1x32xf32> to vector<8x32xf32>
    %115 = arith.addf %112, %114 : vector<8x32xf32>
    %c0_48 = arith.constant 0 : index
    %c0_49 = arith.constant 0 : index
    %116 = vector.load %arg15[%c0_48, %c0_49] : memref<32x128xf32, #tpu.memory_space<vmem>>, vector<32x128xf32>
    %cst_50 = arith.constant dense<0.000000e+00> : vector<8x128xf32>
    %117 = tpu.matmul %115, %116, %cst_50 {dimension_numbers = #tpu.dot_dimension_numbers<[1], [0], [0], [1], [0, 0, 1, 1], [], []>} : vector<8x32xf32>, vector<32x128xf32>, vector<8x128xf32> -> vector<8x128xf32>
    %c0_51 = arith.constant 0 : index
    %c0_52 = arith.constant 0 : index
    %118 = vector.load %arg16[%c0_51, %c0_52] : memref<1x128xf32, #tpu.memory_space<vmem>>, vector<1x128xf32>
    %119 = vector.shape_cast %118 : vector<1x128xf32> to vector<128xf32>
    %120 = vector.shape_cast %119 : vector<128xf32> to vector<1x128xf32>
    %121 = vector.broadcast %120 : vector<1x128xf32> to vector<8x128xf32>
    %122 = arith.addf %117, %121 : vector<8x128xf32>
    %cst_53 = arith.constant 1.702000e+00 : f32
    %123 = vector.broadcast %cst_53 : f32 to vector<8x128xf32>
    %124 = arith.mulf %123, %122 : vector<8x128xf32>
    %125 = arith.negf %124 : vector<8x128xf32>
    %126 = math.exp %125 : vector<8x128xf32>
    %cst_54 = arith.constant 1.000000e+00 : f32
    %127 = vector.broadcast %cst_54 : f32 to vector<8x128xf32>
    %128 = arith.addf %127, %126 : vector<8x128xf32>
    %129 = arith.divf %127, %128 : vector<8x128xf32>
    %130 = arith.mulf %122, %129 : vector<8x128xf32>
    %c0_55 = arith.constant 0 : index
    %c0_56 = arith.constant 0 : index
    %131 = vector.load %arg17[%c0_55, %c0_56] : memref<128x32xf32, #tpu.memory_space<vmem>>, vector<128x32xf32>
    %cst_57 = arith.constant dense<0.000000e+00> : vector<8x32xf32>
    %132 = tpu.matmul %130, %131, %cst_57 {dimension_numbers = #tpu.dot_dimension_numbers<[1], [0], [0], [1], [0, 0, 1, 1], [], []>} : vector<8x128xf32>, vector<128x32xf32>, vector<8x32xf32> -> vector<8x32xf32>
    %c0_58 = arith.constant 0 : index
    %c0_59 = arith.constant 0 : index
    %133 = vector.load %arg18[%c0_58, %c0_59] : memref<1x32xf32, #tpu.memory_space<vmem>>, vector<1x32xf32>
    %134 = vector.shape_cast %133 : vector<1x32xf32> to vector<32xf32>
    %135 = vector.shape_cast %134 : vector<32xf32> to vector<1x32xf32>
    %136 = vector.broadcast %135 : vector<1x32xf32> to vector<8x32xf32>
    %137 = arith.addf %132, %136 : vector<8x32xf32>
    %138 = arith.addf %87, %137 : vector<8x32xf32>
    %c0_60 = arith.constant 0 : index
    %c0_61 = arith.constant 0 : index
    %c0_62 = arith.constant 0 : index
    %139 = vector.load %arg19[%c0_60, %c0_61, %c0_62] : memref<1x8x32xf32, #tpu.memory_space<vmem>>, vector<1x8x32xf32>
    %140 = vector.shape_cast %139 : vector<1x8x32xf32> to vector<8x32xf32>
    %141 = vector.shape_cast %138 : vector<8x32xf32> to vector<1x8x32xf32>
    tpu.vector_store %arg19[%c0_60, %c0_61, %c0_62], %141 {strides = array<i32>} : memref<1x8x32xf32, #tpu.memory_space<vmem>>, vector<1x8x32xf32>,
    return
  }
  func.func @transform_0(%arg0: i32, %arg1: i32) -> (i32, i32, i32) {
    %c0_i32 = arith.constant 0 : i32
    %c0_i32_0 = arith.constant 0 : i32
    %c0_i32_1 = arith.constant 0 : i32
    return %arg0, %c0_i32, %c0_i32_0 : i32, i32, i32
  }
  func.func @transform_1(%arg0: i32, %arg1: i32) -> (i32, i32) {
    %c0_i32 = arith.constant 0 : i32
    %c0_i32_0 = arith.constant 0 : i32
    %c0_i32_1 = arith.constant 0 : i32
    return %c0_i32, %c0_i32_0 : i32, i32
  }
  func.func @transform_2(%arg0: i32, %arg1: i32) -> (i32, i32) {
    %c0_i32 = arith.constant 0 : i32
    %c0_i32_0 = arith.constant 0 : i32
    %c0_i32_1 = arith.constant 0 : i32
    return %c0_i32, %c0_i32_0 : i32, i32
  }
  func.func @transform_3(%arg0: i32, %arg1: i32) -> (i32, i32) {
    %c0_i32 = arith.constant 0 : i32
    %c0_i32_0 = arith.constant 0 : i32
    %c0_i32_1 = arith.constant 0 : i32
    return %c0_i32, %c0_i32_0 : i32, i32
  }
  func.func @transform_4(%arg0: i32, %arg1: i32) -> (i32, i32) {
    %c0_i32 = arith.constant 0 : i32
    %c0_i32_0 = arith.constant 0 : i32
    %c0_i32_1 = arith.constant 0 : i32
    return %c0_i32, %c0_i32_0 : i32, i32
  }
  func.func @transform_5(%arg0: i32, %arg1: i32) -> (i32, i32) {
    %c0_i32 = arith.constant 0 : i32
    %c0_i32_0 = arith.constant 0 : i32
    %c0_i32_1 = arith.constant 0 : i32
    return %c0_i32, %c0_i32_0 : i32, i32
  }
  func.func @transform_6(%arg0: i32, %arg1: i32) -> (i32, i32) {
    %c0_i32 = arith.constant 0 : i32
    %c0_i32_0 = arith.constant 0 : i32
    %c0_i32_1 = arith.constant 0 : i32
    return %c0_i32, %c0_i32_0 : i32, i32
  }
  func.func @transform_7(%arg0: i32, %arg1: i32) -> (i32, i32) {
    %c0_i32 = arith.constant 0 : i32
    %c0_i32_0 = arith.constant 0 : i32
    %c0_i32_1 = arith.constant 0 : i32
    return %c0_i32, %c0_i32_0 : i32, i32
  }
  func.func @transform_8(%arg0: i32, %arg1: i32) -> (i32, i32) {
    %c0_i32 = arith.constant 0 : i32
    %c0_i32_0 = arith.constant 0 : i32
    %c0_i32_1 = arith.constant 0 : i32
    return %c0_i32, %c0_i32_0 : i32, i32
  }
  func.func @transform_9(%arg0: i32, %arg1: i32) -> (i32, i32) {
    %c0_i32 = arith.constant 0 : i32
    %c0_i32_0 = arith.constant 0 : i32
    %c0_i32_1 = arith.constant 0 : i32
    return %c0_i32, %c0_i32_0 : i32, i32
  }
  func.func @transform_10(%arg0: i32, %arg1: i32) -> (i32, i32) {
    %c0_i32 = arith.constant 0 : i32
    %c0_i32_0 = arith.constant 0 : i32
    %c0_i32_1 = arith.constant 0 : i32
    return %c0_i32, %c0_i32_0 : i32, i32
  }
  func.func @transform_11(%arg0: i32, %arg1: i32) -> (i32, i32) {
    %c0_i32 = arith.constant 0 : i32
    %c0_i32_0 = arith.constant 0 : i32
    %c0_i32_1 = arith.constant 0 : i32
    return %c0_i32, %c0_i32_0 : i32, i32
  }
  func.func @transform_12(%arg0: i32, %arg1: i32) -> (i32, i32) {
    %c0_i32 = arith.constant 0 : i32
    %c0_i32_0 = arith.constant 0 : i32
    %c0_i32_1 = arith.constant 0 : i32
    return %c0_i32, %c0_i32_0 : i32, i32
  }
  func.func @transform_13(%arg0: i32, %arg1: i32) -> (i32, i32) {
    %c0_i32 = arith.constant 0 : i32
    %c0_i32_0 = arith.constant 0 : i32
    %c0_i32_1 = arith.constant 0 : i32
    return %c0_i32, %c0_i32_0 : i32, i32
  }
  func.func @transform_14(%arg0: i32, %arg1: i32) -> (i32, i32) {
    %c0_i32 = arith.constant 0 : i32
    %c0_i32_0 = arith.constant 0 : i32
    %c0_i32_1 = arith.constant 0 : i32
    return %c0_i32, %c0_i32_0 : i32, i32
  }
  func.func @transform_15(%arg0: i32, %arg1: i32) -> (i32, i32) {
    %c0_i32 = arith.constant 0 : i32
    %c0_i32_0 = arith.constant 0 : i32
    %c0_i32_1 = arith.constant 0 : i32
    return %c0_i32, %c0_i32_0 : i32, i32
  }
  func.func @transform_16(%arg0: i32, %arg1: i32) -> (i32, i32) {
    %c0_i32 = arith.constant 0 : i32
    %c0_i32_0 = arith.constant 0 : i32
    %c0_i32_1 = arith.constant 0 : i32
    return %c0_i32, %c0_i32_0 : i32, i32
  }
  func.func @transform_17(%arg0: i32, %arg1: i32) -> (i32, i32, i32) {
    %c0_i32 = arith.constant 0 : i32
    %c0_i32_0 = arith.constant 0 : i32
    return %arg0, %arg1, %c0_i32 : i32, i32, i32
  }
}

</mosaic_0001>

<llo_original>
// kernel: tpu_custom_call.1
$region0: #{tpu_custom_call.1}
  #allocation0 [shape = 'u32[]', space=smem, size = 0x4, offset = 0x4, fixed_abs, tag = 'smem constant byte address 0x4 - core index']
  #allocation1 [shape = 'u32[144,128]{1,0:T(1,128)}', space=vmem, size = 0x12000, scoped, tag = 'internal scratch']
  #allocation2 [shape = 'f32[16,32]{1,0:T(8,128)}', space=vmem, size = 0x2000, scoped, tag = 'scratch operand']
  #allocation3 [shape = 'f32[16,32]{1,0:T(8,128)}', space=vmem, size = 0x2000, scoped, tag = 'scratch operand']
  #allocation4 [shape = 'f32[16,32]{1,0:T(8,128)}', space=vmem, size = 0x2000, scoped, tag = 'scratch operand']
  #allocation5 [shape = 'f32[8,32]{1,0:T(8,128)}', space=vmem, size = 0x1000, scoped, tag = 'scratch operand']
  %s0 = inlined_call_operand.vmem [shape: f32[2,16,32], index: 0, kind: input, shape index: {}]
  %s1 = inlined_call_operand.vmem [shape: f32[1,32], index: 1, kind: input, shape index: {}]
  %s2 = inlined_call_operand.vmem [shape: f32[1,32], index: 2, kind: input, shape index: {}]
  %s3 = inlined_call_operand.vmem [shape: f32[32,32], index: 3, kind: input, shape index: {}]
  %s4 = inlined_call_operand.vmem [shape: f32[1,32], index: 4, kind: input, shape index: {}]
  %s5 = inlined_call_operand.vmem [shape: f32[32,32], index: 5, kind: input, shape index: {}]
  %s6 = inlined_call_operand.vmem [shape: f32[1,32], index: 6, kind: input, shape index: {}]
  %s7 = inlined_call_operand.vmem [shape: f32[32,32], index: 7, kind: input, shape index: {}]
  %s8 = inlined_call_operand.vmem [shape: f32[1,32], index: 8, kind: input, shape index: {}]
  %s9 = inlined_call_operand.vmem [shape: f32[32,32], index: 9, kind: input, shape index: {}]
  %s10 = inlined_call_operand.vmem [shape: f32[1,32], index: 10, kind: input, shape index: {}]
  %s11 = inlined_call_operand.vmem [shape: f32[1,32], index: 11, kind: input, shape index: {}]
  %s12 = inlined_call_operand.vmem [shape: f32[1,32], index: 12, kind: input, shape index: {}]
  %s13 = inlined_call_operand.hbm [shape: f32[32,128], index: 13, kind: input, shape index: {}]
  %s14 = inlined_call_operand.vmem [shape: f32[1,128], index: 14, kind: input, shape index: {}]
  %s15 = inlined_call_operand.vmem [shape: f32[128,32], index: 15, kind: input, shape index: {}]
  %s16 = inlined_call_operand.vmem [shape: f32[1,32], index: 16, kind: input, shape index: {}]
  %s17 = inlined_call_operand.hbm [shape: f32[2,16,32], index: 17, kind: output, shape index: {}]
  %s18 = sld [smem:[#allocation0]]
  $region109: #{tpu_custom_call.1} parent=0
    _
  %s20 = ssub.s32 1, %s18
  %s21 = scalar_select 0, %s20, %s18
  $region1: #{tpu_custom_call.1} parent=0
    #allocation6 [shape = 'u8[16384]{0}', space=vmem, size = 0x4000, scoped, tag = 'input window, operand 13, single buffered']
    #allocation7 [shape = 's32[2]{0}', space=sflag, size = 0x8, scoped, tag = 'scoped memory for tpu_custom_call.1']
    #allocation8 [shape = 's32[2]{0}', space=sflag, size = 0x8, scoped, tag = 'scoped memory for tpu_custom_call.1']
    #allocation9 [shape = 'u8[8192]{0}', space=vmem, size = 0x2000, scoped, tag = 'output window, operand 0']
    %22 = vsyncpa [#allocation7], 0
    %23 = vsyncpa [#allocation8], 0
    %s24 = scalar_lea.sflag [#allocation8], 1
    %25 = vsyncpa %s24, 0
    loop: start=0, step=1, limit=6
    $region2: #{tpu_custom_call.1} parent=1 // loop_pre_header
      _
    $region3: #{tpu_custom_call.1} parent=1 // loop_header
      %s27 = sphi 0, %s31
      %p28 = scmp.ge.s32.totalorder %s27, 6
      %s34 = sphi 0, %s46
      %s35 = sphi 0, %s42
      %s36 = sphi 0, %s34
      %s37 = sphi 0, %s35
      %s38 = sphi 0, %s36
      %s39 = sphi 0, %s37
      %s49 = sphi 0, %s51
      %s52 = sphi 0, %s49
      %s53 = sphi 0, %s52
      %s69 = sphi 0, %s53
      %s73 = sphi 0, %s73
      %s75 = sphi 0, %s73
      %s76 = sphi 0, %s75
      %s90 = sphi 0, %s76
      %s94 = sphi 0, %s94
      %s96 = sphi 0, %s94
      %s97 = sphi 0, %s96
      %s111 = sphi 0, %s97
      %s115 = sphi 0, %s115
      %s117 = sphi 0, %s115
      %s118 = sphi 0, %s117
      %s132 = sphi 0, %s118
      %s136 = sphi 0, %s136
      %s138 = sphi 0, %s136
      %s139 = sphi 0, %s138
      %s153 = sphi 0, %s139
      %s157 = sphi 0, %s157
      %s159 = sphi 0, %s157
      %s160 = sphi 0, %s159
      %s174 = sphi 0, %s160
      %s178 = sphi 0, %s178
      %s180 = sphi 0, %s178
      %s181 = sphi 0, %s180
      %s195 = sphi 0, %s181
      %s199 = sphi 0, %s199
      %s201 = sphi 0, %s199
      %s202 = sphi 0, %s201
      %s216 = sphi 0, %s202
      %s220 = sphi 0, %s220
      %s222 = sphi 0, %s220
      %s223 = sphi 0, %s222
      %s237 = sphi 0, %s223
      %s241 = sphi 0, %s241
      %s243 = sphi 0, %s241
      %s244 = sphi 0, %s243
      %s258 = sphi 0, %s244
      %s262 = sphi 0, %s262
      %s264 = sphi 0, %s262
      %s265 = sphi 0, %s264
      %s279 = sphi 0, %s265
      %s283 = sphi 0, %s283
      %s285 = sphi 0, %s283
      %s286 = sphi 0, %s285
      %s300 = sphi 0, %s286
      %s304 = sphi 0, %s304
      %s306 = sphi 0, %s304
      %s307 = sphi 0, %s306
      %s321 = sphi 0, %s307
      %s325 = sphi 0, %s325
      %s327 = sphi 0, %s325
      %s328 = sphi 0, %s327
      %s342 = sphi 0, %s328
      %s346 = sphi 0, %s346
      %s348 = sphi 0, %s346
      %s349 = sphi 0, %s348
      %s363 = sphi 0, %s349
      %s367 = sphi 0, %s367
      %s369 = sphi 0, %s367
      %s370 = sphi 0, %s369
      %s384 = sphi 0, %s370
      %s388 = sphi 0, %s388
      %s390 = sphi 0, %s388
      %s391 = sphi 0, %s390
      %s405 = sphi 0, %s391
      %s413 = sphi 0, %s415
      %s416 = sphi 0, %s413
      %s417 = sphi 0, %s416
      %s433 = sphi 0, %s417
    $region4: #{tpu_custom_call.1} parent=1 // loop_header_branch
      %30 = sbr.rel (%p28) target = $region8
    $region5: #{tpu_custom_call.1} parent=1 // loop_body
      %s32 = ssub.s32 %s27, 1
      %s33 = ssub.s32 %s27, 2
      %s40 = sadd.s32 1, %s35
      %p41 = scmp.ge.s32.totalorder %s40, 2
      %s42 = scalar_select %p41, 0, %s40
      %s43 = sadd.s32 1, %s34
      %s44 = scalar_select %p41, %s43, %s34
      %p45 = scmp.ge.s32.totalorder %s44, 2
      %s46 = scalar_select %p45, 0, %s44
      %s47 = ssub.s32 %s34, %s46
      %p48 = scmp.eq.s32.totalorder %s47, 0
      %s50 = sadd.s32 %s49, 1
      %s51 = scalar_select %p48, %s49, %s50
      %p54 = pneg %p48
      %p55 = scmp.eq.s32.totalorder %s27, 3
      %p56 = por %p54, %p55
      %p57 = scmp.ne.s32.totalorder %s49, %s52
      %p58 = scmp.eq.s32.totalorder %s27, 0
      %p59 = por %p57, %p58
      %p60 = scmp.ne.s32.totalorder %s49, %s52
      %p61 = scmp.eq.s32.totalorder %s32, 3
      %p62 = por %p60, %p61
      %p63 = scmp.ne.s32.totalorder %s52, %s53
      %p64 = scmp.eq.s32.totalorder %s32, 0
      %p65 = por %p63, %p64
      %p66 = scmp.ne.s32.totalorder %s52, %s53
      %p67 = scmp.eq.s32.totalorder %s33, 3
      %p68 = por %p66, %p67
      %p70 = scmp.ne.s32.totalorder %s53, %s69
      %p71 = scmp.eq.s32.totalorder %s33, 0
      %p72 = por %p70, %p71
      %s74 = sadd.s32 %s73, 1
      %p77 = scmp.eq.s32.totalorder %s27, 3
      %p78 = scmp.ne.s32.totalorder %s73, %s75
      %p79 = scmp.eq.s32.totalorder %s27, 0
      %p80 = por %p78, %p79
      %p81 = scmp.ne.s32.totalorder %s73, %s75
      %p82 = scmp.eq.s32.totalorder %s32, 3
      %p83 = por %p81, %p82
      %p84 = scmp.ne.s32.totalorder %s75, %s76
      %p85 = scmp.eq.s32.totalorder %s32, 0
      %p86 = por %p84, %p85
      %p87 = scmp.ne.s32.totalorder %s75, %s76
      %p88 = scmp.eq.s32.totalorder %s33, 3
      %p89 = por %p87, %p88
      %p91 = scmp.ne.s32.totalorder %s76, %s90
      %p92 = scmp.eq.s32.totalorder %s33, 0
      %p93 = por %p91, %p92
      %s95 = sadd.s32 %s94, 1
      %p98 = scmp.eq.s32.totalorder %s27, 3
      %p99 = scmp.ne.s32.totalorder %s94, %s96
      %p100 = scmp.eq.s32.totalorder %s27, 0
      %p101 = por %p99, %p100
      %p102 = scmp.ne.s32.totalorder %s94, %s96
      %p103 = scmp.eq.s32.totalorder %s32, 3
      %p104 = por %p102, %p103
      %p105 = scmp.ne.s32.totalorder %s96, %s97
      %p106 = scmp.eq.s32.totalorder %s32, 0
      %p107 = por %p105, %p106
      %p108 = scmp.ne.s32.totalorder %s96, %s97
      %p109 = scmp.eq.s32.totalorder %s33, 3
      %p110 = por %p108, %p109
      %p112 = scmp.ne.s32.totalorder %s97, %s111
      %p113 = scmp.eq.s32.totalorder %s33, 0
      %p114 = por %p112, %p113
      %s116 = sadd.s32 %s115, 1
      %p119 = scmp.eq.s32.totalorder %s27, 3
      %p120 = scmp.ne.s32.totalorder %s115, %s117
      %p121 = scmp.eq.s32.totalorder %s27, 0
      %p122 = por %p120, %p121
      %p123 = scmp.ne.s32.totalorder %s115, %s117
      %p124 = scmp.eq.s32.totalorder %s32, 3
      %p125 = por %p123, %p124
      %p126 = scmp.ne.s32.totalorder %s117, %s118
      %p127 = scmp.eq.s32.totalorder %s32, 0
      %p128 = por %p126, %p127
      %p129 = scmp.ne.s32.totalorder %s117, %s118
      %p130 = scmp.eq.s32.totalorder %s33, 3
      %p131 = por %p129, %p130
      %p133 = scmp.ne.s32.totalorder %s118, %s132
      %p134 = scmp.eq.s32.totalorder %s33, 0
      %p135 = por %p133, %p134
      %s137 = sadd.s32 %s136, 1
      %p140 = scmp.eq.s32.totalorder %s27, 3
      %p141 = scmp.ne.s32.totalorder %s136, %s138
      %p142 = scmp.eq.s32.totalorder %s27, 0
      %p143 = por %p141, %p142
      %p144 = scmp.ne.s32.totalorder %s136, %s138
      %p145 = scmp.eq.s32.totalorder %s32, 3
      %p146 = por %p144, %p145
      %p147 = scmp.ne.s32.totalorder %s138, %s139
      %p148 = scmp.eq.s32.totalorder %s32, 0
      %p149 = por %p147, %p148
      %p150 = scmp.ne.s32.totalorder %s138, %s139
      %p151 = scmp.eq.s32.totalorder %s33, 3
      %p152 = por %p150, %p151
      %p154 = scmp.ne.s32.totalorder %s139, %s153
      %p155 = scmp.eq.s32.totalorder %s33, 0
      %p156 = por %p154, %p155
      %s158 = sadd.s32 %s157, 1
      %p161 = scmp.eq.s32.totalorder %s27, 3
      %p162 = scmp.ne.s32.totalorder %s157, %s159
      %p163 = scmp.eq.s32.totalorder %s27, 0
      %p164 = por %p162, %p163
      %p165 = scmp.ne.s32.totalorder %s157, %s159
      %p166 = scmp.eq.s32.totalorder %s32, 3
      %p167 = por %p165, %p166
      %p168 = scmp.ne.s32.totalorder %s159, %s160
      %p169 = scmp.eq.s32.totalorder %s32, 0
      %p170 = por %p168, %p169
      %p171 = scmp.ne.s32.totalorder %s159, %s160
      %p172 = scmp.eq.s32.totalorder %s33, 3
      %p173 = por %p171, %p172
      %p175 = scmp.ne.s32.totalorder %s160, %s174
      %p176 = scmp.eq.s32.totalorder %s33, 0
      %p177 = por %p175, %p176
      %s179 = sadd.s32 %s178, 1
      %p182 = scmp.eq.s32.totalorder %s27, 3
      %p183 = scmp.ne.s32.totalorder %s178, %s180
      %p184 = scmp.eq.s32.totalorder %s27, 0
      %p185 = por %p183, %p184
      %p186 = scmp.ne.s32.totalorder %s178, %s180
      %p187 = scmp.eq.s32.totalorder %s32, 3
      %p188 = por %p186, %p187
      %p189 = scmp.ne.s32.totalorder %s180, %s181
      %p190 = scmp.eq.s32.totalorder %s32, 0
      %p191 = por %p189, %p190
      %p192 = scmp.ne.s32.totalorder %s180, %s181
      %p193 = scmp.eq.s32.totalorder %s33, 3
      %p194 = por %p192, %p193
      %p196 = scmp.ne.s32.totalorder %s181, %s195
      %p197 = scmp.eq.s32.totalorder %s33, 0
      %p198 = por %p196, %p197
      %s200 = sadd.s32 %s199, 1
      %p203 = scmp.eq.s32.totalorder %s27, 3
      %p204 = scmp.ne.s32.totalorder %s199, %s201
      %p205 = scmp.eq.s32.totalorder %s27, 0
      %p206 = por %p204, %p205
      %p207 = scmp.ne.s32.totalorder %s199, %s201
      %p208 = scmp.eq.s32.totalorder %s32, 3
      %p209 = por %p207, %p208
      %p210 = scmp.ne.s32.totalorder %s201, %s202
      %p211 = scmp.eq.s32.totalorder %s32, 0
      %p212 = por %p210, %p211
      %p213 = scmp.ne.s32.totalorder %s201, %s202
      %p214 = scmp.eq.s32.totalorder %s33, 3
      %p215 = por %p213, %p214
      %p217 = scmp.ne.s32.totalorder %s202, %s216
      %p218 = scmp.eq.s32.totalorder %s33, 0
      %p219 = por %p217, %p218
      %s221 = sadd.s32 %s220, 1
      %p224 = scmp.eq.s32.totalorder %s27, 3
      %p225 = scmp.ne.s32.totalorder %s220, %s222
      %p226 = scmp.eq.s32.totalorder %s27, 0
      %p227 = por %p225, %p226
      %p228 = scmp.ne.s32.totalorder %s220, %s222
      %p229 = scmp.eq.s32.totalorder %s32, 3
      %p230 = por %p228, %p229
      %p231 = scmp.ne.s32.totalorder %s222, %s223
      %p232 = scmp.eq.s32.totalorder %s32, 0
      %p233 = por %p231, %p232
      %p234 = scmp.ne.s32.totalorder %s222, %s223
      %p235 = scmp.eq.s32.totalorder %s33, 3
      %p236 = por %p234, %p235
      %p238 = scmp.ne.s32.totalorder %s223, %s237
      %p239 = scmp.eq.s32.totalorder %s33, 0
      %p240 = por %p238, %p239
      %s242 = sadd.s32 %s241, 1
      %p245 = scmp.eq.s32.totalorder %s27, 3
      %p246 = scmp.ne.s32.totalorder %s241, %s243
      %p247 = scmp.eq.s32.totalorder %s27, 0
      %p248 = por %p246, %p247
      %p249 = scmp.ne.s32.totalorder %s241, %s243
      %p250 = scmp.eq.s32.totalorder %s32, 3
      %p251 = por %p249, %p250
      %p252 = scmp.ne.s32.totalorder %s243, %s244
      %p253 = scmp.eq.s32.totalorder %s32, 0
      %p254 = por %p252, %p253
      %p255 = scmp.ne.s32.totalorder %s243, %s244
      %p256 = scmp.eq.s32.totalorder %s33, 3
      %p257 = por %p255, %p256
      %p259 = scmp.ne.s32.totalorder %s244, %s258
      %p260 = scmp.eq.s32.totalorder %s33, 0
      %p261 = por %p259, %p260
      %s263 = sadd.s32 %s262, 1
      %p266 = scmp.eq.s32.totalorder %s27, 3
      %p267 = scmp.ne.s32.totalorder %s262, %s264
      %p268 = scmp.eq.s32.totalorder %s27, 0
      %p269 = por %p267, %p268
      %p270 = scmp.ne.s32.totalorder %s262, %s264
      %p271 = scmp.eq.s32.totalorder %s32, 3
      %p272 = por %p270, %p271
      %p273 = scmp.ne.s32.totalorder %s264, %s265
      %p274 = scmp.eq.s32.totalorder %s32, 0
      %p275 = por %p273, %p274
      %p276 = scmp.ne.s32.totalorder %s264, %s265
      %p277 = scmp.eq.s32.totalorder %s33, 3
      %p278 = por %p276, %p277
      %p280 = scmp.ne.s32.totalorder %s265, %s279
      %p281 = scmp.eq.s32.totalorder %s33, 0
      %p282 = por %p280, %p281
      %s284 = sadd.s32 %s283, 1
      %p287 = scmp.eq.s32.totalorder %s27, 3
      %p288 = scmp.ne.s32.totalorder %s283, %s285
      %p289 = scmp.eq.s32.totalorder %s27, 0
      %p290 = por %p288, %p289
      %p291 = scmp.ne.s32.totalorder %s283, %s285
      %p292 = scmp.eq.s32.totalorder %s32, 3
      %p293 = por %p291, %p292
      %p294 = scmp.ne.s32.totalorder %s285, %s286
      %p295 = scmp.eq.s32.totalorder %s32, 0
      %p296 = por %p294, %p295
      %p297 = scmp.ne.s32.totalorder %s285, %s286
      %p298 = scmp.eq.s32.totalorder %s33, 3
      %p299 = por %p297, %p298
      %p301 = scmp.ne.s32.totalorder %s286, %s300
      %p302 = scmp.eq.s32.totalorder %s33, 0
      %p303 = por %p301, %p302
      %s305 = sadd.s32 %s304, 1
      %p308 = scmp.eq.s32.totalorder %s27, 3
      %p309 = scmp.ne.s32.totalorder %s304, %s306
      %p310 = scmp.eq.s32.totalorder %s27, 0
      %p311 = por %p309, %p310
      %p312 = scmp.ne.s32.totalorder %s304, %s306
      %p313 = scmp.eq.s32.totalorder %s32, 3
      %p314 = por %p312, %p313
      %p315 = scmp.ne.s32.totalorder %s306, %s307
      %p316 = scmp.eq.s32.totalorder %s32, 0
      %p317 = por %p315, %p316
      %p318 = scmp.ne.s32.totalorder %s306, %s307
      %p319 = scmp.eq.s32.totalorder %s33, 3
      %p320 = por %p318, %p319
      %p322 = scmp.ne.s32.totalorder %s307, %s321
      %p323 = scmp.eq.s32.totalorder %s33, 0
      %p324 = por %p322, %p323
      %s326 = sadd.s32 %s325, 1
      %p329 = scmp.eq.s32.totalorder %s27, 3
      %p330 = scmp.ne.s32.totalorder %s325, %s327
      %p331 = scmp.eq.s32.totalorder %s27, 0
      %p332 = por %p330, %p331
      %p333 = scmp.ne.s32.totalorder %s325, %s327
      %p334 = scmp.eq.s32.totalorder %s32, 3
      %p335 = por %p333, %p334
      %p336 = scmp.ne.s32.totalorder %s327, %s328
      %p337 = scmp.eq.s32.totalorder %s32, 0
      %p338 = por %p336, %p337
      %p339 = scmp.ne.s32.totalorder %s327, %s328
      %p340 = scmp.eq.s32.totalorder %s33, 3
      %p341 = por %p339, %p340
      %p343 = scmp.ne.s32.totalorder %s328, %s342
      %p344 = scmp.eq.s32.totalorder %s33, 0
      %p345 = por %p343, %p344
      %s347 = sadd.s32 %s346, 1
      %p350 = scmp.eq.s32.totalorder %s27, 3
      %p351 = scmp.ne.s32.totalorder %s346, %s348
      %p352 = scmp.eq.s32.totalorder %s27, 0
      %p353 = por %p351, %p352
      %p354 = scmp.ne.s32.totalorder %s346, %s348
      %p355 = scmp.eq.s32.totalorder %s32, 3
      %p356 = por %p354, %p355
      %p357 = scmp.ne.s32.totalorder %s348, %s349
      %p358 = scmp.eq.s32.totalorder %s32, 0
      %p359 = por %p357, %p358
      %p360 = scmp.ne.s32.totalorder %s348, %s349
      %p361 = scmp.eq.s32.totalorder %s33, 3
      %p362 = por %p360, %p361
      %p364 = scmp.ne.s32.totalorder %s349, %s363
      %p365 = scmp.eq.s32.totalorder %s33, 0
      %p366 = por %p364, %p365
      %s368 = sadd.s32 %s367, 1
      %p371 = scmp.eq.s32.totalorder %s27, 3
      %p372 = scmp.ne.s32.totalorder %s367, %s369
      %p373 = scmp.eq.s32.totalorder %s27, 0
      %p374 = por %p372, %p373
      %p375 = scmp.ne.s32.totalorder %s367, %s369
      %p376 = scmp.eq.s32.totalorder %s32, 3
      %p377 = por %p375, %p376
      %p378 = scmp.ne.s32.totalorder %s369, %s370
      %p379 = scmp.eq.s32.totalorder %s32, 0
      %p380 = por %p378, %p379
      %p381 = scmp.ne.s32.totalorder %s369, %s370
      %p382 = scmp.eq.s32.totalorder %s33, 3
      %p383 = por %p381, %p382
      %p385 = scmp.ne.s32.totalorder %s370, %s384
      %p386 = scmp.eq.s32.totalorder %s33, 0
      %p387 = por %p385, %p386
      %s389 = sadd.s32 %s388, 1
      %p392 = scmp.eq.s32.totalorder %s27, 3
      %p393 = scmp.ne.s32.totalorder %s388, %s390
      %p394 = scmp.eq.s32.totalorder %s27, 0
      %p395 = por %p393, %p394
      %p396 = scmp.ne.s32.totalorder %s388, %s390
      %p397 = scmp.eq.s32.totalorder %s32, 3
      %p398 = por %p396, %p397
      %p399 = scmp.ne.s32.totalorder %s390, %s391
      %p400 = scmp.eq.s32.totalorder %s32, 0
      %p401 = por %p399, %p400
      %p402 = scmp.ne.s32.totalorder %s390, %s391
      %p403 = scmp.eq.s32.totalorder %s33, 3
      %p404 = por %p402, %p403
      %p406 = scmp.ne.s32.totalorder %s391, %s405
      %p407 = scmp.eq.s32.totalorder %s33, 0
      %p408 = por %p406, %p407
      %s409 = ssub.s32 %s34, %s46
      %s410 = ssub.s32 %s35, %s42
      %s411 = sor.u32 %s409, %s410
      %p412 = scmp.eq.s32.totalorder %s411, 0
      %s414 = sadd.s32 %s413, 1
      %s415 = scalar_select %p412, %s413, %s414
      %p418 = pneg %p412
      %p419 = scmp.eq.s32.totalorder %s27, 3
      %p420 = por %p418, %p419
      %p421 = scmp.ne.s32.totalorder %s413, %s416
      %p422 = scmp.eq.s32.totalorder %s27, 0
      %p423 = por %p421, %p422
      %p424 = scmp.ne.s32.totalorder %s413, %s416
      %p425 = scmp.eq.s32.totalorder %s32, 3
      %p426 = por %p424, %p425
      %p427 = scmp.ne.s32.totalorder %s416, %s417
      %p428 = scmp.eq.s32.totalorder %s32, 0
      %p429 = por %p427, %p428
      %p430 = scmp.ne.s32.totalorder %s416, %s417
      %p431 = scmp.eq.s32.totalorder %s33, 3
      %p432 = por %p430, %p431
      %p434 = scmp.ne.s32.totalorder %s417, %s433
      %p435 = scmp.eq.s32.totalorder %s33, 0
      %p436 = por %p434, %p435
      %p437 = scmp.le.s32.totalorder 1, %s27
      %p438 = scmp.lt.s32.totalorder %s27, 5
      %p439 = pnand %p437, %p438
      %p440 = pneg %p439
      // Predicated region
      $region9: #{tpu_custom_call.1} parent=5 // pred_check
        _
      $region10: #{tpu_custom_call.1} parent=5 // pred_check_branch
        %442 = sbr.rel (%p439) target = $region12
      $region11: #{tpu_custom_call.1} parent=5 // pred_region
        %s443 = ssub.s32 %s27, 1
        // Predicated region
        $region13: #{tpu_custom_call.1} parent=11 // pred_check
          %p444 = pneg %p86
        $region14: #{tpu_custom_call.1} parent=11 // pred_check_branch
          %446 = sbr.rel (%p444) target = $region16
        $region15: #{tpu_custom_call.1} parent=11 // pred_region
          _
        $region16: #{tpu_custom_call.1} parent=11 // pred_fallthru
          _
        // Predicated region
        $region17: #{tpu_custom_call.1} parent=11 // pred_check
          %p447 = pneg %p107
        $region18: #{tpu_custom_call.1} parent=11 // pred_check_branch
          %449 = sbr.rel (%p447) target = $region20
        $region19: #{tpu_custom_call.1} parent=11 // pred_region
          _
        $region20: #{tpu_custom_call.1} parent=11 // pred_fallthru
          _
        // Predicated region
        $region21: #{tpu_custom_call.1} parent=11 // pred_check
          %p450 = pneg %p128
        $region22: #{tpu_custom_call.1} parent=11 // pred_check_branch
          %452 = sbr.rel (%p450) target = $region24
        $region23: #{tpu_custom_call.1} parent=11 // pred_region
          _
        $region24: #{tpu_custom_call.1} parent=11 // pred_fallthru
          _
        // Predicated region
        $region25: #{tpu_custom_call.1} parent=11 // pred_check
          %p453 = pneg %p149
        $region26: #{tpu_custom_call.1} parent=11 // pred_check_branch
          %455 = sbr.rel (%p453) target = $region28
        $region27: #{tpu_custom_call.1} parent=11 // pred_region
          _
        $region28: #{tpu_custom_call.1} parent=11 // pred_fallthru
          _
        // Predicated region
        $region29: #{tpu_custom_call.1} parent=11 // pred_check
          %p456 = pneg %p170
        $region30: #{tpu_custom_call.1} parent=11 // pred_check_branch
          %458 = sbr.rel (%p456) target = $region32
        $region31: #{tpu_custom_call.1} parent=11 // pred_region
          _
        $region32: #{tpu_custom_call.1} parent=11 // pred_fallthru
          _
        // Predicated region
        $region33: #{tpu_custom_call.1} parent=11 // pred_check
          %p459 = pneg %p191
        $region34: #{tpu_custom_call.1} parent=11 // pred_check_branch
          %461 = sbr.rel (%p459) target = $region36
        $region35: #{tpu_custom_call.1} parent=11 // pred_region
          _
        $region36: #{tpu_custom_call.1} parent=11 // pred_fallthru
          _
        // Predicated region
        $region37: #{tpu_custom_call.1} parent=11 // pred_check
          %p462 = pneg %p212
        $region38: #{tpu_custom_call.1} parent=11 // pred_check_branch
          %464 = sbr.rel (%p462) target = $region40
        $region39: #{tpu_custom_call.1} parent=11 // pred_region
          _
        $region40: #{tpu_custom_call.1} parent=11 // pred_fallthru
          _
        // Predicated region
        $region41: #{tpu_custom_call.1} parent=11 // pred_check
          %p465 = pneg %p233
        $region42: #{tpu_custom_call.1} parent=11 // pred_check_branch
          %467 = sbr.rel (%p465) target = $region44
        $region43: #{tpu_custom_call.1} parent=11 // pred_region
          _
        $region44: #{tpu_custom_call.1} parent=11 // pred_fallthru
          _
        // Predicated region
        $region45: #{tpu_custom_call.1} parent=11 // pred_check
          %p468 = pneg %p254
        $region46: #{tpu_custom_call.1} parent=11 // pred_check_branch
          %470 = sbr.rel (%p468) target = $region48
        $region47: #{tpu_custom_call.1} parent=11 // pred_region
          _
        $region48: #{tpu_custom_call.1} parent=11 // pred_fallthru
          _
        // Predicated region
        $region49: #{tpu_custom_call.1} parent=11 // pred_check
          %p471 = pneg %p275
        $region50: #{tpu_custom_call.1} parent=11 // pred_check_branch
          %473 = sbr.rel (%p471) target = $region52
        $region51: #{tpu_custom_call.1} parent=11 // pred_region
          _
        $region52: #{tpu_custom_call.1} parent=11 // pred_fallthru
          _
        // Predicated region
        $region53: #{tpu_custom_call.1} parent=11 // pred_check
          %p474 = pneg %p296
        $region54: #{tpu_custom_call.1} parent=11 // pred_check_branch
          %476 = sbr.rel (%p474) target = $region56
        $region55: #{tpu_custom_call.1} parent=11 // pred_region
          _
        $region56: #{tpu_custom_call.1} parent=11 // pred_fallthru
          _
        // Predicated region
        $region57: #{tpu_custom_call.1} parent=11 // pred_check
          %p477 = pneg %p317
        $region58: #{tpu_custom_call.1} parent=11 // pred_check_branch
          %479 = sbr.rel (%p477) target = $region60
        $region59: #{tpu_custom_call.1} parent=11 // pred_region
          _
        $region60: #{tpu_custom_call.1} parent=11 // pred_fallthru
          _
        // Predicated region
        $region61: #{tpu_custom_call.1} parent=11 // pred_check
          %p480 = pneg %p338
        $region62: #{tpu_custom_call.1} parent=11 // pred_check_branch
          %482 = sbr.rel (%p480) target = $region64
        $region63: #{tpu_custom_call.1} parent=11 // pred_region
          %s484 = ssub.s32 512, 512
          %485 = vsyncadd [#allocation7], %s484
          %s486 = sshll.u32 [#allocation6], 4
          %s487 = int_to_ptr.vmem [resolvable:$true] %s486
          %492 = dma.hbm_to_vmem [thread:$0]  %s13, 512, %s487, [#allocation7], 128, 128, 8
        $region64: #{tpu_custom_call.1} parent=11 // pred_fallthru
          _
        // Predicated region
        $region65: #{tpu_custom_call.1} parent=11 // pred_check
          %p493 = pneg %p359
        $region66: #{tpu_custom_call.1} parent=11 // pred_check_branch
          %495 = sbr.rel (%p493) target = $region68
        $region67: #{tpu_custom_call.1} parent=11 // pred_region
          _
        $region68: #{tpu_custom_call.1} parent=11 // pred_fallthru
          _
        // Predicated region
        $region69: #{tpu_custom_call.1} parent=11 // pred_check
          %p496 = pneg %p380
        $region70: #{tpu_custom_call.1} parent=11 // pred_check_branch
          %498 = sbr.rel (%p496) target = $region72
        $region71: #{tpu_custom_call.1} parent=11 // pred_region
          _
        $region72: #{tpu_custom_call.1} parent=11 // pred_fallthru
          _
        // Predicated region
        $region73: #{tpu_custom_call.1} parent=11 // pred_check
          %p499 = pneg %p401
        $region74: #{tpu_custom_call.1} parent=11 // pred_check_branch
          %501 = sbr.rel (%p499) target = $region76
        $region75: #{tpu_custom_call.1} parent=11 // pred_region
          _
        $region76: #{tpu_custom_call.1} parent=11 // pred_fallthru
          _
      $region12: #{tpu_custom_call.1} parent=5 // pred_fallthru
        _
      %p502 = scmp.lt.s32.totalorder %s27, 4
      // Predicated region
      $region77: #{tpu_custom_call.1} parent=5 // pred_check
        %p503 = pneg %p502
      $region78: #{tpu_custom_call.1} parent=5 // pred_check_branch
        %505 = sbr.rel (%p503) target = $region80
      $region79: #{tpu_custom_call.1} parent=5 // pred_region
        // Predicated region
        $region81: #{tpu_custom_call.1} parent=79 // pred_check
          %p506 = pneg %p59
        $region82: #{tpu_custom_call.1} parent=79 // pred_check_branch
          %508 = sbr.rel (%p506) target = $region84
        $region83: #{tpu_custom_call.1} parent=79 // pred_region
          %p509 = scmp.lt.s32.totalorder %s34, 1
          %s510 = scalar_select %p509, %s34, 1
          %s511 = smul.addr %s510, 2
          %s512 = smul.addr %s511, 8
          %s513 = scalar_lea.vmem %s0, %s512
        $region84: #{tpu_custom_call.1} parent=79 // pred_fallthru
          _
      $region80: #{tpu_custom_call.1} parent=5 // pred_fallthru
        _
      %p514 = scmp.le.s32.totalorder 1, %s27
      %p515 = scmp.lt.s32.totalorder %s27, 5
      %p516 = pnand %p514, %p515
      %p517 = pneg %p516
      // Predicated region
      $region85: #{tpu_custom_call.1} parent=5 // pred_check
        _
      $region86: #{tpu_custom_call.1} parent=5 // pred_check_branch
        %519 = sbr.rel (%p516) target = $region88
      $region87: #{tpu_custom_call.1} parent=5 // pred_region
        %s520 = ssub.s32 %s27, 1
        // Predicated region
        $region89: #{tpu_custom_call.1} parent=87 // pred_check
          %p521 = pneg %p338
        $region90: #{tpu_custom_call.1} parent=87 // pred_check_branch
          %523 = sbr.rel (%p521) target = $region92
        $region91: #{tpu_custom_call.1} parent=87 // pred_region
          %524 = dma.done [#allocation7], 512
        $region92: #{tpu_custom_call.1} parent=87 // pred_fallthru
          _
        %p525 = scmp.lt.s32.totalorder %s36, 1
        %s526 = scalar_select %p525, %s36, 1
        %s527 = smul.addr %s526, 2
        %s528 = smul.addr %s527, 8
        %s529 = scalar_lea.vmem %s0, %s528
        %p530 = pneg %p65
        %p531 = pneg %p62
        %p532 = pneg %p86
        %p533 = pneg %p83
        %p534 = pneg %p107
        %p535 = pneg %p104
        %p536 = pneg %p128
        %p537 = pneg %p125
        %p538 = pneg %p149
        %p539 = pneg %p146
        %p540 = pneg %p170
        %p541 = pneg %p167
        %p542 = pneg %p191
        %p543 = pneg %p188
        %p544 = pneg %p212
        %p545 = pneg %p209
        %p546 = pneg %p233
        %p547 = pneg %p230
        %p548 = pneg %p254
        %p549 = pneg %p251
        %p550 = pneg %p275
        %p551 = pneg %p272
        %p552 = pneg %p296
        %p553 = pneg %p293
        %p554 = pneg %p317
        %p555 = pneg %p314
        %p556 = pneg %p338
        %p557 = pneg %p335
        %p558 = pneg %p359
        %p559 = pneg %p356
        %p560 = pneg %p380
        %p561 = pneg %p377
        %p562 = pneg %p401
        %p563 = pneg %p398
        %p564 = pneg %p429
        %p565 = pneg %p426
        %s566 = sand.u32 %s416, 1
        %s567 = scalar_lea.sflag [#allocation8], %s566
        %s568 = sand.u32 %s416, 1
        %s569 = smul.addr %s568, 8
        %s570 = scalar_lea.vmem [#allocation9], %s569
        %p571 = scmp.lt.s32.totalorder %s36, 1
        %s572 = scalar_select %p571, %s36, 1
        %s573 = smul.addr %s572, 2
        %s574 = smul.addr %s573, 8
        %s575 = scalar_lea.vmem %s0, %s574
        %p576 = scmp.eq.s32.totalorder %s37, 0
        // Predicated region
        $region93: #{tpu_custom_call.1} parent=87 // pred_check
          %p577 = pneg %p576
        $region94: #{tpu_custom_call.1} parent=87 // pred_check_branch
          %579 = sbr.rel (%p577) target = $region96
        $region95: #{tpu_custom_call.1} parent=87 // pred_region
          %v580 = vld [vmem:[%s575] sm:$0xff]
          %v581 = vld [vmem:[%s575 + $0x8] sm:$0xff]
          %v582 = vld [vmem:[%s1] sm:$0x1]
          %v583 = vld [vmem:[%s2] sm:$0x1]
          %vm584 = vcmask 261120
          %v585 = vsel %vm584, %v580, 0.0
          %586 = vadd.xlane.f32.xlu0 %v585
          %v587 = vpop.xlane.xlu0 %586
          %v588 = vsel %vm584, %v581, 0.0
          %589 = vadd.xlane.f32.xlu0 %v588
          %v590 = vpop.xlane.xlu0 %589
          %v591 = vrcp.pop 32.0
          %v592 = vmul.f32 %v587, %v591
          %v593 = vmul.f32 %v590, %v591
          %v594 = vsub.f32 %v580, %v592
          %v595 = vsub.f32 %v581, %v593
          %v596 = vmul.f32 %v594, %v594
          %v597 = vmul.f32 %v595, %v595
          %v598 = vsel %vm584, %v596, 0.0
          %599 = vadd.xlane.f32.xlu0 %v598
          %v600 = vpop.xlane.xlu0 %599
          %v601 = vsel %vm584, %v597, 0.0
          %602 = vadd.xlane.f32.xlu0 %v601
          %v603 = vpop.xlane.xlu0 %602
          %v604 = vmul.f32 %v600, %v591
          %v605 = vmul.f32 %v603, %v591
          %v606 = vadd.f32 %v604, 1e-05
          %v607 = vadd.f32 %v605, 1e-05
          %v608 = vrsqrt.pop %v606
          %v609 = vrsqrt.pop %v607
          %v610 = vmul.f32 %v594, %v608
          %v611 = vmul.f32 %v595, %v609
          %v613 = vlaneseq
          %v614 = vshrl.u32 %v613, 7
          %v615 = vsub.s32 0, %v614
          %v616 = vrot.slane %v582, %v615
          %v618 = vmul.f32 %v610, %v616
          %v619 = vmul.f32 %v611, %v616
          %v621 = vlaneseq
          %v622 = vshrl.u32 %v621, 7
          %v623 = vsub.s32 0, %v622
          %v624 = vrot.slane %v583, %v623
          %v626 = vadd.f32 %v618, %v624
          %v627 = vadd.f32 %v619, %v624
          %628 = vst.msk [vmem:[#allocation2] sm:$0xff] %vm584, %v626
          %629 = vst.msk [vmem:[#allocation2 + $0x8] sm:$0xff] %vm584, %v627
          %v630 = vld [vmem:[%s5] sm:$0xff]
          %v631 = vld [vmem:[%s5 + $0x8] sm:$0xff]
          %v632 = vld [vmem:[%s5 + $0x10] sm:$0xff]
          %v633 = vld [vmem:[%s5 + $0x18] sm:$0xff]
          %v634 = vld [vmem:[%s6] sm:$0x1]
          %v636 = vlaneseq
          %v637 = vshrl.u32 %v636, 7
          %v638 = vsub.s32 0, %v637
          %v639 = vrot.slane %v634, %v638
          %v642 = vsel %vm584, %v626, 0
          %v645 = vsel %vm584, %v627, 0
          %647 = vmatprep.subr.mxu0 0.0
          %648 = vmatpush1.msra.mxu0 %v630
          %649 = vmatprep.subr.mxu0 0.0
          %650 = vmatpush1.msra.mxu0 %v631
          %651 = vmatprep.subr.mxu0 0.0
          %652 = vmatpush1.msra.mxu0 %v632
          %653 = vmatprep.subr.mxu0 0.0
          %654 = vmatpush1.msra.mxu0 %v633
          %655 = vmatprep.subr.mxu0 0.0
          %656 = vmatpush1.msra.mxu0 0.0
          %657 = vmatprep.subr.mxu0 0.0
          %658 = vmatpush1.msra.mxu0 0.0
          %659 = vmatprep.subr.mxu0 0.0
          %660 = vmatpush1.msra.mxu0 0.0
          %661 = vmatprep.subr.mxu0 0.0
          %662 = vmatpush1.msra.mxu0 0.0
          %663 = vmatprep.subr.mxu0 0.0
          %664 = vmatpush1.msra.mxu0 0.0
          %665 = vmatprep.subr.mxu0 0.0
          %666 = vmatpush1.msra.mxu0 0.0
          %667 = vmatprep.subr.mxu0 0.0
          %668 = vmatpush1.msra.mxu0 0.0
          %669 = vmatprep.subr.mxu0 0.0
          %670 = vmatpush1.msra.mxu0 0.0
          %671 = vmatprep.subr.mxu0 0.0
          %672 = vmatpush1.msra.mxu0 0.0
          %673 = vmatprep.subr.mxu0 0.0
          %674 = vmatpush1.msra.mxu0 0.0
          %675 = vmatprep.subr.mxu0 0.0
          %676 = vmatpush1.msra.mxu0 0.0
          %677 = vmatprep.subr.mxu0 0.0
          %678 = vmatpush1.msra.mxu0 0.0
          %679 = vmatprep.subr.mxu0 0.0
          %680 = vmatpush1.msra.mxu0 0.0
          %681 = vmatprep.subr.mxu0 0.0
          %682 = vmatpush1.msra.mxu0 0.0
          %683 = vmatprep.subr.mxu0 0.0
          %684 = vmatpush1.msra.mxu0 0.0
          %685 = vmatprep.subr.mxu0 0.0
          %686 = vmatpush1.msra.mxu0 0.0
          %687 = vmatprep.subr.mxu0 0.0
          %688 = vmatpush1.msra.mxu0 0.0
          %689 = vmatprep.subr.mxu0 0.0
          %690 = vmatpush1.msra.mxu0 0.0
          %691 = vmatprep.subr.mxu0 0.0
          %692 = vmatpush1.msra.mxu0 0.0
          %693 = vmatprep.subr.mxu0 0.0
          %694 = vmatpush1.msra.mxu0 0.0
          %695 = vmatprep.subr.mxu0 0.0
          %696 = vmatpush1.msra.mxu0 0.0
          %697 = vmatprep.subr.mxu0 0.0
          %698 = vmatpush1.msra.mxu0 0.0
          %699 = vmatprep.subr.mxu0 0.0
          %700 = vmatpush1.msra.mxu0 0.0
          %701 = vmatprep.subr.mxu0 0.0
          %702 = vmatpush1.msra.mxu0 0.0
          %703 = vmatprep.subr.mxu0 0.0
          %704 = vmatpush1.msra.mxu0 0.0
          %705 = vmatprep.subr.mxu0 0.0
          %706 = vmatpush1.msra.mxu0 0.0
          %707 = vmatprep.subr.mxu0 0.0
          %708 = vmatpush1.msra.mxu0 0.0
          %709 = vmatprep.subr.mxu0 0.0
          %710 = vmatpush1.msra.mxu0 0.0
          %711 = vmatprep.mubr.f32.mxu0 0.0
          %712 = vmatmul.mubr.f32.gmra.mrb[0].mxu0 %v642
          %v713 = vpop.f32.mrb[0].mxu0
          %v714 = vadd.f32 %v639, %v713
          %v715 = vpop.f32.mrb[0].mxu0
          %716 = vmatprep.mubr.f32.mxu0 0.0
          %717 = vmatmul.mubr.f32.gmra.mrb[0].mxu0 %v645
          %v718 = vpop.f32.mrb[0].mxu0
          %v719 = vadd.f32 %v639, %v718
          %v720 = vpop.f32.mrb[0].mxu0
          %721 = vdwg.mxu0
          %722 = vst.msk [vmem:[#allocation3] sm:$0xff] %vm584, %v714
          %723 = vst.msk [vmem:[#allocation3 + $0x8] sm:$0xff] %vm584, %v719
          %v724 = vld [vmem:[%s7] sm:$0xff]
          %v725 = vld [vmem:[%s7 + $0x8] sm:$0xff]
          %v726 = vld [vmem:[%s7 + $0x10] sm:$0xff]
          %v727 = vld [vmem:[%s7 + $0x18] sm:$0xff]
          %v728 = vld [vmem:[%s8] sm:$0x1]
          %v730 = vlaneseq
          %v731 = vshrl.u32 %v730, 7
          %v732 = vsub.s32 0, %v731
          %v733 = vrot.slane %v728, %v732
          %735 = vmatprep.subr.mxu0 0.0
          %736 = vmatpush1.msra.mxu0 %v724
          %737 = vmatprep.subr.mxu0 0.0
          %738 = vmatpush1.msra.mxu0 %v725
          %739 = vmatprep.subr.mxu0 0.0
          %740 = vmatpush1.msra.mxu0 %v726
          %741 = vmatprep.subr.mxu0 0.0
          %742 = vmatpush1.msra.mxu0 %v727
          %743 = vmatprep.subr.mxu0 0.0
          %744 = vmatpush1.msra.mxu0 0.0
          %745 = vmatprep.subr.mxu0 0.0
          %746 = vmatpush1.msra.mxu0 0.0
          %747 = vmatprep.subr.mxu0 0.0
          %748 = vmatpush1.msra.mxu0 0.0
          %749 = vmatprep.subr.mxu0 0.0
          %750 = vmatpush1.msra.mxu0 0.0
          %751 = vmatprep.subr.mxu0 0.0
          %752 = vmatpush1.msra.mxu0 0.0
          %753 = vmatprep.subr.mxu0 0.0
          %754 = vmatpush1.msra.mxu0 0.0
          %755 = vmatprep.subr.mxu0 0.0
          %756 = vmatpush1.msra.mxu0 0.0
          %757 = vmatprep.subr.mxu0 0.0
          %758 = vmatpush1.msra.mxu0 0.0
          %759 = vmatprep.subr.mxu0 0.0
          %760 = vmatpush1.msra.mxu0 0.0
          %761 = vmatprep.subr.mxu0 0.0
          %762 = vmatpush1.msra.mxu0 0.0
          %763 = vmatprep.subr.mxu0 0.0
          %764 = vmatpush1.msra.mxu0 0.0
          %765 = vmatprep.subr.mxu0 0.0
          %766 = vmatpush1.msra.mxu0 0.0
          %767 = vmatprep.subr.mxu0 0.0
          %768 = vmatpush1.msra.mxu0 0.0
          %769 = vmatprep.subr.mxu0 0.0
          %770 = vmatpush1.msra.mxu0 0.0
          %771 = vmatprep.subr.mxu0 0.0
          %772 = vmatpush1.msra.mxu0 0.0
          %773 = vmatprep.subr.mxu0 0.0
          %774 = vmatpush1.msra.mxu0 0.0
          %775 = vmatprep.subr.mxu0 0.0
          %776 = vmatpush1.msra.mxu0 0.0
          %777 = vmatprep.subr.mxu0 0.0
          %778 = vmatpush1.msra.mxu0 0.0
          %779 = vmatprep.subr.mxu0 0.0
          %780 = vmatpush1.msra.mxu0 0.0
          %781 = vmatprep.subr.mxu0 0.0
          %782 = vmatpush1.msra.mxu0 0.0
          %783 = vmatprep.subr.mxu0 0.0
          %784 = vmatpush1.msra.mxu0 0.0
          %785 = vmatprep.subr.mxu0 0.0
          %786 = vmatpush1.msra.mxu0 0.0
          %787 = vmatprep.subr.mxu0 0.0
          %788 = vmatpush1.msra.mxu0 0.0
          %789 = vmatprep.subr.mxu0 0.0
          %790 = vmatpush1.msra.mxu0 0.0
          %791 = vmatprep.subr.mxu0 0.0
          %792 = vmatpush1.msra.mxu0 0.0
          %793 = vmatprep.subr.mxu0 0.0
          %794 = vmatpush1.msra.mxu0 0.0
          %795 = vmatprep.subr.mxu0 0.0
          %796 = vmatpush1.msra.mxu0 0.0
          %797 = vmatprep.subr.mxu0 0.0
          %798 = vmatpush1.msra.mxu0 0.0
          %799 = vmatprep.mubr.f32.mxu0 0.0
          %800 = vmatmul.mubr.f32.gmra.mrb[0].mxu0 %v642
          %v801 = vpop.f32.mrb[0].mxu0
          %v802 = vadd.f32 %v733, %v801
          %v803 = vpop.f32.mrb[0].mxu0
          %804 = vmatprep.mubr.f32.mxu0 0.0
          %805 = vmatmul.mubr.f32.gmra.mrb[0].mxu0 %v645
          %v806 = vpop.f32.mrb[0].mxu0
          %v807 = vadd.f32 %v733, %v806
          %v808 = vpop.f32.mrb[0].mxu0
          %809 = vdwg.mxu0
          %810 = vst.msk [vmem:[#allocation4] sm:$0xff] %vm584, %v802
          %811 = vst.msk [vmem:[#allocation4 + $0x8] sm:$0xff] %vm584, %v807
        $region96: #{tpu_custom_call.1} parent=87 // pred_fallthru
          _
        %s812 = smul.u32 %s37, 8
        %s813 = scalar_lea.vmem %s575, %s812
        %v814 = vld [vmem:[%s813] sm:$0xff]
        %s815 = scalar_lea.vmem [#allocation2], %s812
        %v816 = vld [vmem:[%s815] sm:$0xff]
        %v817 = vld [vmem:[%s3] sm:$0xff]
        %v818 = vld [vmem:[%s3 + $0x8] sm:$0xff]
        %v819 = vld [vmem:[%s3 + $0x10] sm:$0xff]
        %v820 = vld [vmem:[%s3 + $0x18] sm:$0xff]
        %v821 = vld [vmem:[%s4] sm:$0x1]
        %v823 = vlaneseq
        %v824 = vshrl.u32 %v823, 7
        %v825 = vsub.s32 0, %v824
        %v826 = vrot.slane %v821, %v825
        %vm828 = vcmask 261120
        %v830 = vsel %vm828, %v816, 0
        %832 = vmatprep.subr.mxu0 0.0
        %833 = vmatpush1.msra.mxu0 %v817
        %834 = vmatprep.subr.mxu0 0.0
        %835 = vmatpush1.msra.mxu0 %v818
        %836 = vmatprep.subr.mxu0 0.0
        %837 = vmatpush1.msra.mxu0 %v819
        %838 = vmatprep.subr.mxu0 0.0
        %839 = vmatpush1.msra.mxu0 %v820
        %840 = vmatprep.subr.mxu0 0.0
        %841 = vmatpush1.msra.mxu0 0.0
        %842 = vmatprep.subr.mxu0 0.0
        %843 = vmatpush1.msra.mxu0 0.0
        %844 = vmatprep.subr.mxu0 0.0
        %845 = vmatpush1.msra.mxu0 0.0
        %846 = vmatprep.subr.mxu0 0.0
        %847 = vmatpush1.msra.mxu0 0.0
        %848 = vmatprep.subr.mxu0 0.0
        %849 = vmatpush1.msra.mxu0 0.0
        %850 = vmatprep.subr.mxu0 0.0
        %851 = vmatpush1.msra.mxu0 0.0
        %852 = vmatprep.subr.mxu0 0.0
        %853 = vmatpush1.msra.mxu0 0.0
        %854 = vmatprep.subr.mxu0 0.0
        %855 = vmatpush1.msra.mxu0 0.0
        %856 = vmatprep.subr.mxu0 0.0
        %857 = vmatpush1.msra.mxu0 0.0
        %858 = vmatprep.subr.mxu0 0.0
        %859 = vmatpush1.msra.mxu0 0.0
        %860 = vmatprep.subr.mxu0 0.0
        %861 = vmatpush1.msra.mxu0 0.0
        %862 = vmatprep.subr.mxu0 0.0
        %863 = vmatpush1.msra.mxu0 0.0
        %864 = vmatprep.subr.mxu0 0.0
        %865 = vmatpush1.msra.mxu0 0.0
        %866 = vmatprep.subr.mxu0 0.0
        %867 = vmatpush1.msra.mxu0 0.0
        %868 = vmatprep.subr.mxu0 0.0
        %869 = vmatpush1.msra.mxu0 0.0
        %870 = vmatprep.subr.mxu0 0.0
        %871 = vmatpush1.msra.mxu0 0.0
        %872 = vmatprep.subr.mxu0 0.0
        %873 = vmatpush1.msra.mxu0 0.0
        %874 = vmatprep.subr.mxu0 0.0
        %875 = vmatpush1.msra.mxu0 0.0
        %876 = vmatprep.subr.mxu0 0.0
        %877 = vmatpush1.msra.mxu0 0.0
        %878 = vmatprep.subr.mxu0 0.0
        %879 = vmatpush1.msra.mxu0 0.0
        %880 = vmatprep.subr.mxu0 0.0
        %881 = vmatpush1.msra.mxu0 0.0
        %882 = vmatprep.subr.mxu0 0.0
        %883 = vmatpush1.msra.mxu0 0.0
        %884 = vmatprep.subr.mxu0 0.0
        %885 = vmatpush1.msra.mxu0 0.0
        %886 = vmatprep.subr.mxu0 0.0
        %887 = vmatpush1.msra.mxu0 0.0
        %888 = vmatprep.subr.mxu0 0.0
        %889 = vmatpush1.msra.mxu0 0.0
        %890 = vmatprep.subr.mxu0 0.0
        %891 = vmatpush1.msra.mxu0 0.0
        %892 = vmatprep.subr.mxu0 0.0
        %893 = vmatpush1.msra.mxu0 0.0
        %894 = vmatprep.subr.mxu0 0.0
        %895 = vmatpush1.msra.mxu0 0.0
        %896 = vmatprep.mubr.f32.mxu0 0.0
        %897 = vmatmul.mubr.f32.gmra.mrb[0].mxu0 %v830
        %v898 = vpop.f32.mrb[0].mxu0
        %v899 = vadd.f32 %v826, %v898
        %v900 = vpop.f32.mrb[0].mxu0
        %901 = vdwg.mxu0
        %v902 = vld [vmem:[#allocation3] sm:$0xff]
        %v903 = vld [vmem:[#allocation3 + $0x8] sm:$0xff]
        %v904 = vld [vmem:[#allocation4] sm:$0xff]
        %v905 = vld [vmem:[#allocation4 + $0x8] sm:$0xff]
        %vm906 = vcmask 64512
        %v908 = vsel %vm906, %v899, 0
        %v911 = vsel %vm906, %v902, 0
        %v914 = vsel %vm906, %v903, 0
        %916 = vmatprep.subr.mxu0 0.0
        %917 = vmatpush1.xpose.msra.mxu0 %v911
        %918 = vmatprep.subr.mxu0 0.0
        %919 = vmatpush1.xpose.msra.mxu0 %v914
        %920 = vmatprep.subr.mxu0 0.0
        %921 = vmatpush1.xpose.msra.mxu0 0.0
        %922 = vmatprep.subr.mxu0 0.0
        %923 = vmatpush1.xpose.msra.mxu0 0.0
        %924 = vmatprep.subr.mxu0 0.0
        %925 = vmatpush1.xpose.msra.mxu0 0.0
        %926 = vmatprep.subr.mxu0 0.0
        %927 = vmatpush1.xpose.msra.mxu0 0.0
        %928 = vmatprep.subr.mxu0 0.0
        %929 = vmatpush1.xpose.msra.mxu0 0.0
        %930 = vmatprep.subr.mxu0 0.0
        %931 = vmatpush1.xpose.msra.mxu0 0.0
        %932 = vmatprep.subr.mxu0 0.0
        %933 = vmatpush1.xpose.msra.mxu0 0.0
        %934 = vmatprep.subr.mxu0 0.0
        %935 = vmatpush1.xpose.msra.mxu0 0.0
        %936 = vmatprep.subr.mxu0 0.0
        %937 = vmatpush1.xpose.msra.mxu0 0.0
        %938 = vmatprep.subr.mxu0 0.0
        %939 = vmatpush1.xpose.msra.mxu0 0.0
        %940 = vmatprep.subr.mxu0 0.0
        %941 = vmatpush1.xpose.msra.mxu0 0.0
        %942 = vmatprep.subr.mxu0 0.0
        %943 = vmatpush1.xpose.msra.mxu0 0.0
        %944 = vmatprep.subr.mxu0 0.0
        %945 = vmatpush1.xpose.msra.mxu0 0.0
        %946 = vmatprep.subr.mxu0 0.0
        %947 = vmatpush1.xpose.msra.mxu0 0.0
        %948 = vmatprep.subr.mxu0 0.0
        %949 = vmatpush1.xpose.msra.mxu0 0.0
        %950 = vmatprep.subr.mxu0 0.0
        %951 = vmatpush1.xpose.msra.mxu0 0.0
        %952 = vmatprep.subr.mxu0 0.0
        %953 = vmatpush1.xpose.msra.mxu0 0.0
        %954 = vmatprep.subr.mxu0 0.0
        %955 = vmatpush1.xpose.msra.mxu0 0.0
        %956 = vmatprep.subr.mxu0 0.0
        %957 = vmatpush1.xpose.msra.mxu0 0.0
        %958 = vmatprep.subr.mxu0 0.0
        %959 = vmatpush1.xpose.msra.mxu0 0.0
        %960 = vmatprep.subr.mxu0 0.0
        %961 = vmatpush1.xpose.msra.mxu0 0.0
        %962 = vmatprep.subr.mxu0 0.0
        %963 = vmatpush1.xpose.msra.mxu0 0.0
        %964 = vmatprep.subr.mxu0 0.0
        %965 = vmatpush1.xpose.msra.mxu0 0.0
        %966 = vmatprep.subr.mxu0 0.0
        %967 = vmatpush1.xpose.msra.mxu0 0.0
        %968 = vmatprep.subr.mxu0 0.0
        %969 = vmatpush1.xpose.msra.mxu0 0.0
        %970 = vmatprep.subr.mxu0 0.0
        %971 = vmatpush1.xpose.msra.mxu0 0.0
        %972 = vmatprep.subr.mxu0 0.0
        %973 = vmatpush1.xpose.msra.mxu0 0.0
        %974 = vmatprep.subr.mxu0 0.0
        %975 = vmatpush1.xpose.msra.mxu0 0.0
        %976 = vmatprep.subr.mxu0 0.0
        %977 = vmatpush1.xpose.msra.mxu0 0.0
        %978 = vmatprep.subr.mxu0 0.0
        %979 = vmatpush1.xpose.msra.mxu0 0.0
        %980 = vmatprep.mubr.f32.mxu0 0.0
        %981 = vmatmul.mubr.f32.gmra.mrb[0].mxu0 %v908
        %v982 = vpop.f32.mrb[0].mxu0
        %v983 = vadd.f32 0.0, %v982
        %v984 = vpop.f32.mrb[0].mxu0
        %985 = vdwg.mxu0
        %vm986 = vcmask 130048
        %v987 = vsel %vm986, %v983, -inf
        %988 = vmax.xlane.f32.xlu0 %v987
        %v989 = vpop.xlane.xlu0 %988
        %v990 = vsub.f32 %v983, %v989
        %v991 = vmul.f32 %v990, 1.442695
        %v992 = vpow.pop %v991
        %v993 = vsel %vm986, %v992, 0.0
        %994 = vadd.xlane.f32.xlu0 %v993
        %v995 = vpop.xlane.xlu0 %994
        %v996 = vrcp.pop %v995
        %v997 = vmul.f32 %v992, %v996
        %v999 = vsel %vm986, %v997, 0
        %1001 = vmatprep.subr.mxu0 0.0
        %1002 = vmatpush1.msra.mxu0 %v904
        %1003 = vmatprep.subr.mxu0 0.0
        %1004 = vmatpush1.msra.mxu0 %v905
        %1005 = vmatprep.subr.mxu0 0.0
        %1006 = vmatpush1.msra.mxu0 0.0
        %1007 = vmatprep.subr.mxu0 0.0
        %1008 = vmatpush1.msra.mxu0 0.0
        %1009 = vmatprep.subr.mxu0 0.0
        %1010 = vmatpush1.msra.mxu0 0.0
        %1011 = vmatprep.subr.mxu0 0.0
        %1012 = vmatpush1.msra.mxu0 0.0
        %1013 = vmatprep.subr.mxu0 0.0
        %1014 = vmatpush1.msra.mxu0 0.0
        %1015 = vmatprep.subr.mxu0 0.0
        %1016 = vmatpush1.msra.mxu0 0.0
        %1017 = vmatprep.subr.mxu0 0.0
        %1018 = vmatpush1.msra.mxu0 0.0
        %1019 = vmatprep.subr.mxu0 0.0
        %1020 = vmatpush1.msra.mxu0 0.0
        %1021 = vmatprep.subr.mxu0 0.0
        %1022 = vmatpush1.msra.mxu0 0.0
        %1023 = vmatprep.subr.mxu0 0.0
        %1024 = vmatpush1.msra.mxu0 0.0
        %1025 = vmatprep.subr.mxu0 0.0
        %1026 = vmatpush1.msra.mxu0 0.0
        %1027 = vmatprep.subr.mxu0 0.0
        %1028 = vmatpush1.msra.mxu0 0.0
        %1029 = vmatprep.subr.mxu0 0.0
        %1030 = vmatpush1.msra.mxu0 0.0
        %1031 = vmatprep.subr.mxu0 0.0
        %1032 = vmatpush1.msra.mxu0 0.0
        %1033 = vmatprep.subr.mxu0 0.0
        %1034 = vmatpush1.msra.mxu0 0.0
        %1035 = vmatprep.subr.mxu0 0.0
        %1036 = vmatpush1.msra.mxu0 0.0
        %1037 = vmatprep.subr.mxu0 0.0
        %1038 = vmatpush1.msra.mxu0 0.0
        %1039 = vmatprep.subr.mxu0 0.0
        %1040 = vmatpush1.msra.mxu0 0.0
        %1041 = vmatprep.subr.mxu0 0.0
        %1042 = vmatpush1.msra.mxu0 0.0
        %1043 = vmatprep.subr.mxu0 0.0
        %1044 = vmatpush1.msra.mxu0 0.0
        %1045 = vmatprep.subr.mxu0 0.0
        %1046 = vmatpush1.msra.mxu0 0.0
        %1047 = vmatprep.subr.mxu0 0.0
        %1048 = vmatpush1.msra.mxu0 0.0
        %1049 = vmatprep.subr.mxu0 0.0
        %1050 = vmatpush1.msra.mxu0 0.0
        %1051 = vmatprep.subr.mxu0 0.0
        %1052 = vmatpush1.msra.mxu0 0.0
        %1053 = vmatprep.subr.mxu0 0.0
        %1054 = vmatpush1.msra.mxu0 0.0
        %1055 = vmatprep.subr.mxu0 0.0
        %1056 = vmatpush1.msra.mxu0 0.0
        %1057 = vmatprep.subr.mxu0 0.0
        %1058 = vmatpush1.msra.mxu0 0.0
        %1059 = vmatprep.subr.mxu0 0.0
        %1060 = vmatpush1.msra.mxu0 0.0
        %1061 = vmatprep.subr.mxu0 0.0
        %1062 = vmatpush1.msra.mxu0 0.0
        %1063 = vmatprep.subr.mxu0 0.0
        %1064 = vmatpush1.msra.mxu0 0.0
        %1065 = vmatprep.mubr.f32.mxu0 0.0
        %1066 = vmatmul.mubr.f32.gmra.mrb[0].mxu0 %v999
        %v1067 = vpop.f32.mrb[0].mxu0
        %v1068 = vadd.f32 0.0, %v1067
        %v1069 = vpop.f32.mrb[0].mxu0
        %1070 = vdwg.mxu0
        %1071 = vst.msk [vmem:[#allocation5] sm:$0xff] %vm906, %v1068
        %1072 = vrot.lane.b32.xlu0 %v899, 120
        %v1073 = vpop.permute.xlu0 %1072
        %1074 = vrot.lane.b32.xlu0 %v902, 120
        %v1075 = vpop.permute.xlu0 %1074
        %1076 = vrot.lane.b32.xlu0 %v903, 120
        %v1077 = vpop.permute.xlu0 %1076
        %v1078 = vsel %vm906, %v1073, 0
        %v1080 = vsel %vm906, %v1075, 0
        %v1082 = vsel %vm906, %v1077, 0
        %1084 = vmatprep.subr.mxu0 0.0
        %1085 = vmatpush1.xpose.msra.mxu0 %v1080
        %1086 = vmatprep.subr.mxu0 0.0
        %1087 = vmatpush1.xpose.msra.mxu0 %v1082
        %1088 = vmatprep.subr.mxu0 0.0
        %1089 = vmatpush1.xpose.msra.mxu0 0.0
        %1090 = vmatprep.subr.mxu0 0.0
        %1091 = vmatpush1.xpose.msra.mxu0 0.0
        %1092 = vmatprep.subr.mxu0 0.0
        %1093 = vmatpush1.xpose.msra.mxu0 0.0
        %1094 = vmatprep.subr.mxu0 0.0
        %1095 = vmatpush1.xpose.msra.mxu0 0.0
        %1096 = vmatprep.subr.mxu0 0.0
        %1097 = vmatpush1.xpose.msra.mxu0 0.0
        %1098 = vmatprep.subr.mxu0 0.0
        %1099 = vmatpush1.xpose.msra.mxu0 0.0
        %1100 = vmatprep.subr.mxu0 0.0
        %1101 = vmatpush1.xpose.msra.mxu0 0.0
        %1102 = vmatprep.subr.mxu0 0.0
        %1103 = vmatpush1.xpose.msra.mxu0 0.0
        %1104 = vmatprep.subr.mxu0 0.0
        %1105 = vmatpush1.xpose.msra.mxu0 0.0
        %1106 = vmatprep.subr.mxu0 0.0
        %1107 = vmatpush1.xpose.msra.mxu0 0.0
        %1108 = vmatprep.subr.mxu0 0.0
        %1109 = vmatpush1.xpose.msra.mxu0 0.0
        %1110 = vmatprep.subr.mxu0 0.0
        %1111 = vmatpush1.xpose.msra.mxu0 0.0
        %1112 = vmatprep.subr.mxu0 0.0
        %1113 = vmatpush1.xpose.msra.mxu0 0.0
        %1114 = vmatprep.subr.mxu0 0.0
        %1115 = vmatpush1.xpose.msra.mxu0 0.0
        %1116 = vmatprep.subr.mxu0 0.0
        %1117 = vmatpush1.xpose.msra.mxu0 0.0
        %1118 = vmatprep.subr.mxu0 0.0
        %1119 = vmatpush1.xpose.msra.mxu0 0.0
        %1120 = vmatprep.subr.mxu0 0.0
        %1121 = vmatpush1.xpose.msra.mxu0 0.0
        %1122 = vmatprep.subr.mxu0 0.0
        %1123 = vmatpush1.xpose.msra.mxu0 0.0
        %1124 = vmatprep.subr.mxu0 0.0
        %1125 = vmatpush1.xpose.msra.mxu0 0.0
        %1126 = vmatprep.subr.mxu0 0.0
        %1127 = vmatpush1.xpose.msra.mxu0 0.0
        %1128 = vmatprep.subr.mxu0 0.0
        %1129 = vmatpush1.xpose.msra.mxu0 0.0
        %1130 = vmatprep.subr.mxu0 0.0
        %1131 = vmatpush1.xpose.msra.mxu0 0.0
        %1132 = vmatprep.subr.mxu0 0.0
        %1133 = vmatpush1.xpose.msra.mxu0 0.0
        %1134 = vmatprep.subr.mxu0 0.0
        %1135 = vmatpush1.xpose.msra.mxu0 0.0
        %1136 = vmatprep.subr.mxu0 0.0
        %1137 = vmatpush1.xpose.msra.mxu0 0.0
        %1138 = vmatprep.subr.mxu0 0.0
        %1139 = vmatpush1.xpose.msra.mxu0 0.0
        %1140 = vmatprep.subr.mxu0 0.0
        %1141 = vmatpush1.xpose.msra.mxu0 0.0
        %1142 = vmatprep.subr.mxu0 0.0
        %1143 = vmatpush1.xpose.msra.mxu0 0.0
        %1144 = vmatprep.subr.mxu0 0.0
        %1145 = vmatpush1.xpose.msra.mxu0 0.0
        %1146 = vmatprep.subr.mxu0 0.0
        %1147 = vmatpush1.xpose.msra.mxu0 0.0
        %1148 = vmatprep.mubr.f32.mxu0 0.0
        %1149 = vmatmul.mubr.f32.gmra.mrb[0].mxu0 %v1078
        %v1150 = vpop.f32.mrb[0].mxu0
        %v1151 = vadd.f32 0.0, %v1150
        %v1152 = vpop.f32.mrb[0].mxu0
        %1153 = vdwg.mxu0
        %v1154 = vsel %vm986, %v1151, -inf
        %1155 = vmax.xlane.f32.xlu0 %v1154
        %v1156 = vpop.xlane.xlu0 %1155
        %v1157 = vsub.f32 %v1151, %v1156
        %v1158 = vmul.f32 %v1157, 1.442695
        %v1159 = vpow.pop %v1158
        %v1160 = vsel %vm986, %v1159, 0.0
        %1161 = vadd.xlane.f32.xlu0 %v1160
        %v1162 = vpop.xlane.xlu0 %1161
        %v1163 = vrcp.pop %v1162
        %v1164 = vmul.f32 %v1159, %v1163
        %1167 = vrot.lane.b32.xlu0 %v904, 120
        %v1168 = vpop.permute.xlu0 %1167
        %1169 = vrot.lane.b32.xlu0 %v905, 120
        %v1170 = vpop.permute.xlu0 %1169
        %v1174 = vsel %vm986, %v1164, 0
        %1176 = vmatprep.subr.mxu0 0.0
        %1177 = vmatpush1.msra.mxu0 %v1168
        %1178 = vmatprep.subr.mxu0 0.0
        %1179 = vmatpush1.msra.mxu0 %v1170
        %1180 = vmatprep.subr.mxu0 0.0
        %1181 = vmatpush1.msra.mxu0 0.0
        %1182 = vmatprep.subr.mxu0 0.0
        %1183 = vmatpush1.msra.mxu0 0.0
        %1184 = vmatprep.subr.mxu0 0.0
        %1185 = vmatpush1.msra.mxu0 0.0
        %1186 = vmatprep.subr.mxu0 0.0
        %1187 = vmatpush1.msra.mxu0 0.0
        %1188 = vmatprep.subr.mxu0 0.0
        %1189 = vmatpush1.msra.mxu0 0.0
        %1190 = vmatprep.subr.mxu0 0.0
        %1191 = vmatpush1.msra.mxu0 0.0
        %1192 = vmatprep.subr.mxu0 0.0
        %1193 = vmatpush1.msra.mxu0 0.0
        %1194 = vmatprep.subr.mxu0 0.0
        %1195 = vmatpush1.msra.mxu0 0.0
        %1196 = vmatprep.subr.mxu0 0.0
        %1197 = vmatpush1.msra.mxu0 0.0
        %1198 = vmatprep.subr.mxu0 0.0
        %1199 = vmatpush1.msra.mxu0 0.0
        %1200 = vmatprep.subr.mxu0 0.0
        %1201 = vmatpush1.msra.mxu0 0.0
        %1202 = vmatprep.subr.mxu0 0.0
        %1203 = vmatpush1.msra.mxu0 0.0
        %1204 = vmatprep.subr.mxu0 0.0
        %1205 = vmatpush1.msra.mxu0 0.0
        %1206 = vmatprep.subr.mxu0 0.0
        %1207 = vmatpush1.msra.mxu0 0.0
        %1208 = vmatprep.subr.mxu0 0.0
        %1209 = vmatpush1.msra.mxu0 0.0
        %1210 = vmatprep.subr.mxu0 0.0
        %1211 = vmatpush1.msra.mxu0 0.0
        %1212 = vmatprep.subr.mxu0 0.0
        %1213 = vmatpush1.msra.mxu0 0.0
        %1214 = vmatprep.subr.mxu0 0.0
        %1215 = vmatpush1.msra.mxu0 0.0
        %1216 = vmatprep.subr.mxu0 0.0
        %1217 = vmatpush1.msra.mxu0 0.0
        %1218 = vmatprep.subr.mxu0 0.0
        %1219 = vmatpush1.msra.mxu0 0.0
        %1220 = vmatprep.subr.mxu0 0.0
        %1221 = vmatpush1.msra.mxu0 0.0
        %1222 = vmatprep.subr.mxu0 0.0
        %1223 = vmatpush1.msra.mxu0 0.0
        %1224 = vmatprep.subr.mxu0 0.0
        %1225 = vmatpush1.msra.mxu0 0.0
        %1226 = vmatprep.subr.mxu0 0.0
        %1227 = vmatpush1.msra.mxu0 0.0
        %1228 = vmatprep.subr.mxu0 0.0
        %1229 = vmatpush1.msra.mxu0 0.0
        %1230 = vmatprep.subr.mxu0 0.0
        %1231 = vmatpush1.msra.mxu0 0.0
        %1232 = vmatprep.subr.mxu0 0.0
        %1233 = vmatpush1.msra.mxu0 0.0
        %1234 = vmatprep.subr.mxu0 0.0
        %1235 = vmatpush1.msra.mxu0 0.0
        %1236 = vmatprep.subr.mxu0 0.0
        %1237 = vmatpush1.msra.mxu0 0.0
        %1238 = vmatprep.subr.mxu0 0.0
        %1239 = vmatpush1.msra.mxu0 0.0
        %1240 = vmatprep.mubr.f32.mxu0 0.0
        %1241 = vmatmul.mubr.f32.gmra.mrb[0].mxu0 %v1174
        %v1242 = vpop.f32.mrb[0].mxu0
        %v1243 = vadd.f32 0.0, %v1242
        %v1244 = vpop.f32.mrb[0].mxu0
        %1245 = vdwg.mxu0
        %1247 = vrot.lane.b32.xlu0 %v1243, 8
        %v1248 = vpop.permute.xlu0 %1247
        %vm1250 = vcmask 130112
        %1251 = vst.msk [vmem:[#allocation5] sm:$0xff] %vm1250, %v1248
        %1252 = vrot.lane.b32.xlu0 %v899, 112
        %v1253 = vpop.permute.xlu0 %1252
        %1254 = vrot.lane.b32.xlu0 %v902, 112
        %v1255 = vpop.permute.xlu0 %1254
        %1256 = vrot.lane.b32.xlu0 %v903, 112
        %v1257 = vpop.permute.xlu0 %1256
        %v1258 = vsel %vm906, %v1253, 0
        %v1260 = vsel %vm906, %v1255, 0
        %v1262 = vsel %vm906, %v1257, 0
        %1264 = vmatprep.subr.mxu0 0.0
        %1265 = vmatpush1.xpose.msra.mxu0 %v1260
        %1266 = vmatprep.subr.mxu0 0.0
        %1267 = vmatpush1.xpose.msra.mxu0 %v1262
        %1268 = vmatprep.subr.mxu0 0.0
        %1269 = vmatpush1.xpose.msra.mxu0 0.0
        %1270 = vmatprep.subr.mxu0 0.0
        %1271 = vmatpush1.xpose.msra.mxu0 0.0
        %1272 = vmatprep.subr.mxu0 0.0
        %1273 = vmatpush1.xpose.msra.mxu0 0.0
        %1274 = vmatprep.subr.mxu0 0.0
        %1275 = vmatpush1.xpose.msra.mxu0 0.0
        %1276 = vmatprep.subr.mxu0 0.0
        %1277 = vmatpush1.xpose.msra.mxu0 0.0
        %1278 = vmatprep.subr.mxu0 0.0
        %1279 = vmatpush1.xpose.msra.mxu0 0.0
        %1280 = vmatprep.subr.mxu0 0.0
        %1281 = vmatpush1.xpose.msra.mxu0 0.0
        %1282 = vmatprep.subr.mxu0 0.0
        %1283 = vmatpush1.xpose.msra.mxu0 0.0
        %1284 = vmatprep.subr.mxu0 0.0
        %1285 = vmatpush1.xpose.msra.mxu0 0.0
        %1286 = vmatprep.subr.mxu0 0.0
        %1287 = vmatpush1.xpose.msra.mxu0 0.0
        %1288 = vmatprep.subr.mxu0 0.0
        %1289 = vmatpush1.xpose.msra.mxu0 0.0
        %1290 = vmatprep.subr.mxu0 0.0
        %1291 = vmatpush1.xpose.msra.mxu0 0.0
        %1292 = vmatprep.subr.mxu0 0.0
        %1293 = vmatpush1.xpose.msra.mxu0 0.0
        %1294 = vmatprep.subr.mxu0 0.0
        %1295 = vmatpush1.xpose.msra.mxu0 0.0
        %1296 = vmatprep.subr.mxu0 0.0
        %1297 = vmatpush1.xpose.msra.mxu0 0.0
        %1298 = vmatprep.subr.mxu0 0.0
        %1299 = vmatpush1.xpose.msra.mxu0 0.0
        %1300 = vmatprep.subr.mxu0 0.0
        %1301 = vmatpush1.xpose.msra.mxu0 0.0
        %1302 = vmatprep.subr.mxu0 0.0
        %1303 = vmatpush1.xpose.msra.mxu0 0.0
        %1304 = vmatprep.subr.mxu0 0.0
        %1305 = vmatpush1.xpose.msra.mxu0 0.0
        %1306 = vmatprep.subr.mxu0 0.0
        %1307 = vmatpush1.xpose.msra.mxu0 0.0
        %1308 = vmatprep.subr.mxu0 0.0
        %1309 = vmatpush1.xpose.msra.mxu0 0.0
        %1310 = vmatprep.subr.mxu0 0.0
        %1311 = vmatpush1.xpose.msra.mxu0 0.0
        %1312 = vmatprep.subr.mxu0 0.0
        %1313 = vmatpush1.xpose.msra.mxu0 0.0
        %1314 = vmatprep.subr.mxu0 0.0
        %1315 = vmatpush1.xpose.msra.mxu0 0.0
        %1316 = vmatprep.subr.mxu0 0.0
        %1317 = vmatpush1.xpose.msra.mxu0 0.0
        %1318 = vmatprep.subr.mxu0 0.0
        %1319 = vmatpush1.xpose.msra.mxu0 0.0
        %1320 = vmatprep.subr.mxu0 0.0
        %1321 = vmatpush1.xpose.msra.mxu0 0.0
        %1322 = vmatprep.subr.mxu0 0.0
        %1323 = vmatpush1.xpose.msra.mxu0 0.0
        %1324 = vmatprep.subr.mxu0 0.0
        %1325 = vmatpush1.xpose.msra.mxu0 0.0
        %1326 = vmatprep.subr.mxu0 0.0
        %1327 = vmatpush1.xpose.msra.mxu0 0.0
        %1328 = vmatprep.mubr.f32.mxu0 0.0
        %1329 = vmatmul.mubr.f32.gmra.mrb[0].mxu0 %v1258
        %v1330 = vpop.f32.mrb[0].mxu0
        %v1331 = vadd.f32 0.0, %v1330
        %v1332 = vpop.f32.mrb[0].mxu0
        %1333 = vdwg.mxu0
        %v1334 = vsel %vm986, %v1331, -inf
        %1335 = vmax.xlane.f32.xlu0 %v1334
        %v1336 = vpop.xlane.xlu0 %1335
        %v1337 = vsub.f32 %v1331, %v1336
        %v1338 = vmul.f32 %v1337, 1.442695
        %v1339 = vpow.pop %v1338
        %v1340 = vsel %vm986, %v1339, 0.0
        %1341 = vadd.xlane.f32.xlu0 %v1340
        %v1342 = vpop.xlane.xlu0 %1341
        %v1343 = vrcp.pop %v1342
        %v1344 = vmul.f32 %v1339, %v1343
        %1345 = vrot.lane.b32.xlu0 %v904, 112
        %v1346 = vpop.permute.xlu0 %1345
        %1347 = vrot.lane.b32.xlu0 %v905, 112
        %v1348 = vpop.permute.xlu0 %1347
        %v1352 = vsel %vm986, %v1344, 0
        %1354 = vmatprep.subr.mxu0 0.0
        %1355 = vmatpush1.msra.mxu0 %v1346
        %1356 = vmatprep.subr.mxu0 0.0
        %1357 = vmatpush1.msra.mxu0 %v1348
        %1358 = vmatprep.subr.mxu0 0.0
        %1359 = vmatpush1.msra.mxu0 0.0
        %1360 = vmatprep.subr.mxu0 0.0
        %1361 = vmatpush1.msra.mxu0 0.0
        %1362 = vmatprep.subr.mxu0 0.0
        %1363 = vmatpush1.msra.mxu0 0.0
        %1364 = vmatprep.subr.mxu0 0.0
        %1365 = vmatpush1.msra.mxu0 0.0
        %1366 = vmatprep.subr.mxu0 0.0
        %1367 = vmatpush1.msra.mxu0 0.0
        %1368 = vmatprep.subr.mxu0 0.0
        %1369 = vmatpush1.msra.mxu0 0.0
        %1370 = vmatprep.subr.mxu0 0.0
        %1371 = vmatpush1.msra.mxu0 0.0
        %1372 = vmatprep.subr.mxu0 0.0
        %1373 = vmatpush1.msra.mxu0 0.0
        %1374 = vmatprep.subr.mxu0 0.0
        %1375 = vmatpush1.msra.mxu0 0.0
        %1376 = vmatprep.subr.mxu0 0.0
        %1377 = vmatpush1.msra.mxu0 0.0
        %1378 = vmatprep.subr.mxu0 0.0
        %1379 = vmatpush1.msra.mxu0 0.0
        %1380 = vmatprep.subr.mxu0 0.0
        %1381 = vmatpush1.msra.mxu0 0.0
        %1382 = vmatprep.subr.mxu0 0.0
        %1383 = vmatpush1.msra.mxu0 0.0
        %1384 = vmatprep.subr.mxu0 0.0
        %1385 = vmatpush1.msra.mxu0 0.0
        %1386 = vmatprep.subr.mxu0 0.0
        %1387 = vmatpush1.msra.mxu0 0.0
        %1388 = vmatprep.subr.mxu0 0.0
        %1389 = vmatpush1.msra.mxu0 0.0
        %1390 = vmatprep.subr.mxu0 0.0
        %1391 = vmatpush1.msra.mxu0 0.0
        %1392 = vmatprep.subr.mxu0 0.0
        %1393 = vmatpush1.msra.mxu0 0.0
        %1394 = vmatprep.subr.mxu0 0.0
        %1395 = vmatpush1.msra.mxu0 0.0
        %1396 = vmatprep.subr.mxu0 0.0
        %1397 = vmatpush1.msra.mxu0 0.0
        %1398 = vmatprep.subr.mxu0 0.0
        %1399 = vmatpush1.msra.mxu0 0.0
        %1400 = vmatprep.subr.mxu0 0.0
        %1401 = vmatpush1.msra.mxu0 0.0
        %1402 = vmatprep.subr.mxu0 0.0
        %1403 = vmatpush1.msra.mxu0 0.0
        %1404 = vmatprep.subr.mxu0 0.0
        %1405 = vmatpush1.msra.mxu0 0.0
        %1406 = vmatprep.subr.mxu0 0.0
        %1407 = vmatpush1.msra.mxu0 0.0
        %1408 = vmatprep.subr.mxu0 0.0
        %1409 = vmatpush1.msra.mxu0 0.0
        %1410 = vmatprep.subr.mxu0 0.0
        %1411 = vmatpush1.msra.mxu0 0.0
        %1412 = vmatprep.subr.mxu0 0.0
        %1413 = vmatpush1.msra.mxu0 0.0
        %1414 = vmatprep.subr.mxu0 0.0
        %1415 = vmatpush1.msra.mxu0 0.0
        %1416 = vmatprep.subr.mxu0 0.0
        %1417 = vmatpush1.msra.mxu0 0.0
        %1418 = vmatprep.mubr.f32.mxu0 0.0
        %1419 = vmatmul.mubr.f32.gmra.mrb[0].mxu0 %v1352
        %v1420 = vpop.f32.mrb[0].mxu0
        %v1421 = vadd.f32 0.0, %v1420
        %v1422 = vpop.f32.mrb[0].mxu0
        %1423 = vdwg.mxu0
        %1425 = vrot.lane.b32.xlu0 %v1421, 16
        %v1426 = vpop.permute.xlu0 %1425
        %vm1428 = vcmask 195712
        %1429 = vst.msk [vmem:[#allocation5] sm:$0xff] %vm1428, %v1426
        %1430 = vrot.lane.b32.xlu0 %v899, 104
        %v1431 = vpop.permute.xlu0 %1430
        %1432 = vrot.lane.b32.xlu0 %v902, 104
        %v1433 = vpop.permute.xlu0 %1432
        %1434 = vrot.lane.b32.xlu0 %v903, 104
        %v1435 = vpop.permute.xlu0 %1434
        %v1436 = vsel %vm906, %v1431, 0
        %v1438 = vsel %vm906, %v1433, 0
        %v1440 = vsel %vm906, %v1435, 0
        %1442 = vmatprep.subr.mxu0 0.0
        %1443 = vmatpush1.xpose.msra.mxu0 %v1438
        %1444 = vmatprep.subr.mxu0 0.0
        %1445 = vmatpush1.xpose.msra.mxu0 %v1440
        %1446 = vmatprep.subr.mxu0 0.0
        %1447 = vmatpush1.xpose.msra.mxu0 0.0
        %1448 = vmatprep.subr.mxu0 0.0
        %1449 = vmatpush1.xpose.msra.mxu0 0.0
        %1450 = vmatprep.subr.mxu0 0.0
        %1451 = vmatpush1.xpose.msra.mxu0 0.0
        %1452 = vmatprep.subr.mxu0 0.0
        %1453 = vmatpush1.xpose.msra.mxu0 0.0
        %1454 = vmatprep.subr.mxu0 0.0
        %1455 = vmatpush1.xpose.msra.mxu0 0.0
        %1456 = vmatprep.subr.mxu0 0.0
        %1457 = vmatpush1.xpose.msra.mxu0 0.0
        %1458 = vmatprep.subr.mxu0 0.0
        %1459 = vmatpush1.xpose.msra.mxu0 0.0
        %1460 = vmatprep.subr.mxu0 0.0
        %1461 = vmatpush1.xpose.msra.mxu0 0.0
        %1462 = vmatprep.subr.mxu0 0.0
        %1463 = vmatpush1.xpose.msra.mxu0 0.0
        %1464 = vmatprep.subr.mxu0 0.0
        %1465 = vmatpush1.xpose.msra.mxu0 0.0
        %1466 = vmatprep.subr.mxu0 0.0
        %1467 = vmatpush1.xpose.msra.mxu0 0.0
        %1468 = vmatprep.subr.mxu0 0.0
        %1469 = vmatpush1.xpose.msra.mxu0 0.0
        %1470 = vmatprep.subr.mxu0 0.0
        %1471 = vmatpush1.xpose.msra.mxu0 0.0
        %1472 = vmatprep.subr.mxu0 0.0
        %1473 = vmatpush1.xpose.msra.mxu0 0.0
        %1474 = vmatprep.subr.mxu0 0.0
        %1475 = vmatpush1.xpose.msra.mxu0 0.0
        %1476 = vmatprep.subr.mxu0 0.0
        %1477 = vmatpush1.xpose.msra.mxu0 0.0
        %1478 = vmatprep.subr.mxu0 0.0
        %1479 = vmatpush1.xpose.msra.mxu0 0.0
        %1480 = vmatprep.subr.mxu0 0.0
        %1481 = vmatpush1.xpose.msra.mxu0 0.0
        %1482 = vmatprep.subr.mxu0 0.0
        %1483 = vmatpush1.xpose.msra.mxu0 0.0
        %1484 = vmatprep.subr.mxu0 0.0
        %1485 = vmatpush1.xpose.msra.mxu0 0.0
        %1486 = vmatprep.subr.mxu0 0.0
        %1487 = vmatpush1.xpose.msra.mxu0 0.0
        %1488 = vmatprep.subr.mxu0 0.0
        %1489 = vmatpush1.xpose.msra.mxu0 0.0
        %1490 = vmatprep.subr.mxu0 0.0
        %1491 = vmatpush1.xpose.msra.mxu0 0.0
        %1492 = vmatprep.subr.mxu0 0.0
        %1493 = vmatpush1.xpose.msra.mxu0 0.0
        %1494 = vmatprep.subr.mxu0 0.0
        %1495 = vmatpush1.xpose.msra.mxu0 0.0
        %1496 = vmatprep.subr.mxu0 0.0
        %1497 = vmatpush1.xpose.msra.mxu0 0.0
        %1498 = vmatprep.subr.mxu0 0.0
        %1499 = vmatpush1.xpose.msra.mxu0 0.0
        %1500 = vmatprep.subr.mxu0 0.0
        %1501 = vmatpush1.xpose.msra.mxu0 0.0
        %1502 = vmatprep.subr.mxu0 0.0
        %1503 = vmatpush1.xpose.msra.mxu0 0.0
        %1504 = vmatprep.subr.mxu0 0.0
        %1505 = vmatpush1.xpose.msra.mxu0 0.0
        %1506 = vmatprep.mubr.f32.mxu0 0.0
        %1507 = vmatmul.mubr.f32.gmra.mrb[0].mxu0 %v1436
        %v1508 = vpop.f32.mrb[0].mxu0
        %v1509 = vadd.f32 0.0, %v1508
        %v1510 = vpop.f32.mrb[0].mxu0
        %1511 = vdwg.mxu0
        %v1512 = vsel %vm986, %v1509, -inf
        %1513 = vmax.xlane.f32.xlu0 %v1512
        %v1514 = vpop.xlane.xlu0 %1513
        %v1515 = vsub.f32 %v1509, %v1514
        %v1516 = vmul.f32 %v1515, 1.442695
        %v1517 = vpow.pop %v1516
        %v1518 = vsel %vm986, %v1517, 0.0
        %1519 = vadd.xlane.f32.xlu0 %v1518
        %v1520 = vpop.xlane.xlu0 %1519
        %v1521 = vrcp.pop %v1520
        %v1522 = vmul.f32 %v1517, %v1521
        %1523 = vrot.lane.b32.xlu0 %v904, 104
        %v1524 = vpop.permute.xlu0 %1523
        %1525 = vrot.lane.b32.xlu0 %v905, 104
        %v1526 = vpop.permute.xlu0 %1525
        %v1530 = vsel %vm986, %v1522, 0
        %1532 = vmatprep.subr.mxu0 0.0
        %1533 = vmatpush1.msra.mxu0 %v1524
        %1534 = vmatprep.subr.mxu0 0.0
        %1535 = vmatpush1.msra.mxu0 %v1526
        %1536 = vmatprep.subr.mxu0 0.0
        %1537 = vmatpush1.msra.mxu0 0.0
        %1538 = vmatprep.subr.mxu0 0.0
        %1539 = vmatpush1.msra.mxu0 0.0
        %1540 = vmatprep.subr.mxu0 0.0
        %1541 = vmatpush1.msra.mxu0 0.0
        %1542 = vmatprep.subr.mxu0 0.0
        %1543 = vmatpush1.msra.mxu0 0.0
        %1544 = vmatprep.subr.mxu0 0.0
        %1545 = vmatpush1.msra.mxu0 0.0
        %1546 = vmatprep.subr.mxu0 0.0
        %1547 = vmatpush1.msra.mxu0 0.0
        %1548 = vmatprep.subr.mxu0 0.0
        %1549 = vmatpush1.msra.mxu0 0.0
        %1550 = vmatprep.subr.mxu0 0.0
        %1551 = vmatpush1.msra.mxu0 0.0
        %1552 = vmatprep.subr.mxu0 0.0
        %1553 = vmatpush1.msra.mxu0 0.0
        %1554 = vmatprep.subr.mxu0 0.0
        %1555 = vmatpush1.msra.mxu0 0.0
        %1556 = vmatprep.subr.mxu0 0.0
        %1557 = vmatpush1.msra.mxu0 0.0
        %1558 = vmatprep.subr.mxu0 0.0
        %1559 = vmatpush1.msra.mxu0 0.0
        %1560 = vmatprep.subr.mxu0 0.0
        %1561 = vmatpush1.msra.mxu0 0.0
        %1562 = vmatprep.subr.mxu0 0.0
        %1563 = vmatpush1.msra.mxu0 0.0
        %1564 = vmatprep.subr.mxu0 0.0
        %1565 = vmatpush1.msra.mxu0 0.0
        %1566 = vmatprep.subr.mxu0 0.0
        %1567 = vmatpush1.msra.mxu0 0.0
        %1568 = vmatprep.subr.mxu0 0.0
        %1569 = vmatpush1.msra.mxu0 0.0
        %1570 = vmatprep.subr.mxu0 0.0
        %1571 = vmatpush1.msra.mxu0 0.0
        %1572 = vmatprep.subr.mxu0 0.0
        %1573 = vmatpush1.msra.mxu0 0.0
        %1574 = vmatprep.subr.mxu0 0.0
        %1575 = vmatpush1.msra.mxu0 0.0
        %1576 = vmatprep.subr.mxu0 0.0
        %1577 = vmatpush1.msra.mxu0 0.0
        %1578 = vmatprep.subr.mxu0 0.0
        %1579 = vmatpush1.msra.mxu0 0.0
        %1580 = vmatprep.subr.mxu0 0.0
        %1581 = vmatpush1.msra.mxu0 0.0
        %1582 = vmatprep.subr.mxu0 0.0
        %1583 = vmatpush1.msra.mxu0 0.0
        %1584 = vmatprep.subr.mxu0 0.0
        %1585 = vmatpush1.msra.mxu0 0.0
        %1586 = vmatprep.subr.mxu0 0.0
        %1587 = vmatpush1.msra.mxu0 0.0
        %1588 = vmatprep.subr.mxu0 0.0
        %1589 = vmatpush1.msra.mxu0 0.0
        %1590 = vmatprep.subr.mxu0 0.0
        %1591 = vmatpush1.msra.mxu0 0.0
        %1592 = vmatprep.subr.mxu0 0.0
        %1593 = vmatpush1.msra.mxu0 0.0
        %1594 = vmatprep.subr.mxu0 0.0
        %1595 = vmatpush1.msra.mxu0 0.0
        %1596 = vmatprep.mubr.f32.mxu0 0.0
        %1597 = vmatmul.mubr.f32.gmra.mrb[0].mxu0 %v1530
        %v1598 = vpop.f32.mrb[0].mxu0
        %v1599 = vadd.f32 0.0, %v1598
        %v1600 = vpop.f32.mrb[0].mxu0
        %1601 = vdwg.mxu0
        %1603 = vrot.lane.b32.xlu0 %v1599, 24
        %v1604 = vpop.permute.xlu0 %1603
        %vm1606 = vcmask 261312
        %1607 = vst.msk [vmem:[#allocation5] sm:$0xff] %vm1606, %v1604
        %v1608 = vld [vmem:[#allocation5] sm:$0xff]
        %v1609 = vld [vmem:[%s9] sm:$0xff]
        %v1610 = vld [vmem:[%s9 + $0x8] sm:$0xff]
        %v1611 = vld [vmem:[%s9 + $0x10] sm:$0xff]
        %v1612 = vld [vmem:[%s9 + $0x18] sm:$0xff]
        %v1613 = vld [vmem:[%s10] sm:$0x1]
        %v1615 = vlaneseq
        %v1616 = vshrl.u32 %v1615, 7
        %v1617 = vsub.s32 0, %v1616
        %v1618 = vrot.slane %v1613, %v1617
        %v1621 = vsel %vm828, %v1608, 0
        %1623 = vmatprep.subr.mxu0 0.0
        %1624 = vmatpush1.msra.mxu0 %v1609
        %1625 = vmatprep.subr.mxu0 0.0
        %1626 = vmatpush1.msra.mxu0 %v1610
        %1627 = vmatprep.subr.mxu0 0.0
        %1628 = vmatpush1.msra.mxu0 %v1611
        %1629 = vmatprep.subr.mxu0 0.0
        %1630 = vmatpush1.msra.mxu0 %v1612
        %1631 = vmatprep.subr.mxu0 0.0
        %1632 = vmatpush1.msra.mxu0 0.0
        %1633 = vmatprep.subr.mxu0 0.0
        %1634 = vmatpush1.msra.mxu0 0.0
        %1635 = vmatprep.subr.mxu0 0.0
        %1636 = vmatpush1.msra.mxu0 0.0
        %1637 = vmatprep.subr.mxu0 0.0
        %1638 = vmatpush1.msra.mxu0 0.0
        %1639 = vmatprep.subr.mxu0 0.0
        %1640 = vmatpush1.msra.mxu0 0.0
        %1641 = vmatprep.subr.mxu0 0.0
        %1642 = vmatpush1.msra.mxu0 0.0
        %1643 = vmatprep.subr.mxu0 0.0
        %1644 = vmatpush1.msra.mxu0 0.0
        %1645 = vmatprep.subr.mxu0 0.0
        %1646 = vmatpush1.msra.mxu0 0.0
        %1647 = vmatprep.subr.mxu0 0.0
        %1648 = vmatpush1.msra.mxu0 0.0
        %1649 = vmatprep.subr.mxu0 0.0
        %1650 = vmatpush1.msra.mxu0 0.0
        %1651 = vmatprep.subr.mxu0 0.0
        %1652 = vmatpush1.msra.mxu0 0.0
        %1653 = vmatprep.subr.mxu0 0.0
        %1654 = vmatpush1.msra.mxu0 0.0
        %1655 = vmatprep.subr.mxu0 0.0
        %1656 = vmatpush1.msra.mxu0 0.0
        %1657 = vmatprep.subr.mxu0 0.0
        %1658 = vmatpush1.msra.mxu0 0.0
        %1659 = vmatprep.subr.mxu0 0.0
        %1660 = vmatpush1.msra.mxu0 0.0
        %1661 = vmatprep.subr.mxu0 0.0
        %1662 = vmatpush1.msra.mxu0 0.0
        %1663 = vmatprep.subr.mxu0 0.0
        %1664 = vmatpush1.msra.mxu0 0.0
        %1665 = vmatprep.subr.mxu0 0.0
        %1666 = vmatpush1.msra.mxu0 0.0
        %1667 = vmatprep.subr.mxu0 0.0
        %1668 = vmatpush1.msra.mxu0 0.0
        %1669 = vmatprep.subr.mxu0 0.0
        %1670 = vmatpush1.msra.mxu0 0.0
        %1671 = vmatprep.subr.mxu0 0.0
        %1672 = vmatpush1.msra.mxu0 0.0
        %1673 = vmatprep.subr.mxu0 0.0
        %1674 = vmatpush1.msra.mxu0 0.0
        %1675 = vmatprep.subr.mxu0 0.0
        %1676 = vmatpush1.msra.mxu0 0.0
        %1677 = vmatprep.subr.mxu0 0.0
        %1678 = vmatpush1.msra.mxu0 0.0
        %1679 = vmatprep.subr.mxu0 0.0
        %1680 = vmatpush1.msra.mxu0 0.0
        %1681 = vmatprep.subr.mxu0 0.0
        %1682 = vmatpush1.msra.mxu0 0.0
        %1683 = vmatprep.subr.mxu0 0.0
        %1684 = vmatpush1.msra.mxu0 0.0
        %1685 = vmatprep.subr.mxu0 0.0
        %1686 = vmatpush1.msra.mxu0 0.0
        %1687 = vmatprep.mubr.f32.mxu0 0.0
        %1688 = vmatmul.mubr.f32.gmra.mrb[0].mxu0 %v1621
        %v1689 = vpop.f32.mrb[0].mxu0
        %v1690 = vadd.f32 %v1618, %v1689
        %v1691 = vpop.f32.mrb[0].mxu0
        %1692 = vdwg.mxu0
        %v1693 = vadd.f32 %v814, %v1690
        %v1694 = vld [vmem:[%s11] sm:$0x1]
        %v1695 = vld [vmem:[%s12] sm:$0x1]
        %v1696 = vsel %vm828, %v1693, 0.0
        %1697 = vadd.xlane.f32.xlu0 %v1696
        %v1698 = vpop.xlane.xlu0 %1697
        %v1699 = vrcp.pop 32.0
        %v1700 = vmul.f32 %v1698, %v1699
        %v1701 = vsub.f32 %v1693, %v1700
        %v1702 = vmul.f32 %v1701, %v1701
        %v1703 = vsel %vm828, %v1702, 0.0
        %1704 = vadd.xlane.f32.xlu0 %v1703
        %v1705 = vpop.xlane.xlu0 %1704
        %v1706 = vmul.f32 %v1705, %v1699
        %v1707 = vadd.f32 %v1706, 1e-05
        %v1708 = vrsqrt.pop %v1707
        %v1709 = vmul.f32 %v1701, %v1708
        %v1711 = vlaneseq
        %v1712 = vshrl.u32 %v1711, 7
        %v1713 = vsub.s32 0, %v1712
        %v1714 = vrot.slane %v1694, %v1713
        %v1716 = vmul.f32 %v1709, %v1714
        %v1718 = vlaneseq
        %v1719 = vshrl.u32 %v1718, 7
        %v1720 = vsub.s32 0, %v1719
        %v1721 = vrot.slane %v1695, %v1720
        %v1723 = vadd.f32 %v1716, %v1721
        %v1724 = vld [vmem:[#allocation6] sm:$0xff]
        %v1725 = vld [vmem:[#allocation6 + $0x8] sm:$0xff]
        %v1726 = vld [vmem:[#allocation6 + $0x10] sm:$0xff]
        %v1727 = vld [vmem:[#allocation6 + $0x18] sm:$0xff]
        %v1728 = vld [vmem:[%s14] sm:$0x1]
        %v1730 = vlaneseq
        %v1731 = vshrl.u32 %v1730, 7
        %v1732 = vsub.s32 0, %v1731
        %v1733 = vrot.slane %v1728, %v1732
        %v1736 = vsel %vm828, %v1723, 0
        %1738 = vmatprep.subr.mxu0 0.0
        %1739 = vmatpush1.msra.mxu0 %v1724
        %1740 = vmatprep.subr.mxu0 0.0
        %1741 = vmatpush1.msra.mxu0 %v1725
        %1742 = vmatprep.subr.mxu0 0.0
        %1743 = vmatpush1.msra.mxu0 %v1726
        %1744 = vmatprep.subr.mxu0 0.0
        %1745 = vmatpush1.msra.mxu0 %v1727
        %1746 = vmatprep.subr.mxu0 0.0
        %1747 = vmatpush1.msra.mxu0 0.0
        %1748 = vmatprep.subr.mxu0 0.0
        %1749 = vmatpush1.msra.mxu0 0.0
        %1750 = vmatprep.subr.mxu0 0.0
        %1751 = vmatpush1.msra.mxu0 0.0
        %1752 = vmatprep.subr.mxu0 0.0
        %1753 = vmatpush1.msra.mxu0 0.0
        %1754 = vmatprep.subr.mxu0 0.0
        %1755 = vmatpush1.msra.mxu0 0.0
        %1756 = vmatprep.subr.mxu0 0.0
        %1757 = vmatpush1.msra.mxu0 0.0
        %1758 = vmatprep.subr.mxu0 0.0
        %1759 = vmatpush1.msra.mxu0 0.0
        %1760 = vmatprep.subr.mxu0 0.0
        %1761 = vmatpush1.msra.mxu0 0.0
        %1762 = vmatprep.subr.mxu0 0.0
        %1763 = vmatpush1.msra.mxu0 0.0
        %1764 = vmatprep.subr.mxu0 0.0
        %1765 = vmatpush1.msra.mxu0 0.0
        %1766 = vmatprep.subr.mxu0 0.0
        %1767 = vmatpush1.msra.mxu0 0.0
        %1768 = vmatprep.subr.mxu0 0.0
        %1769 = vmatpush1.msra.mxu0 0.0
        %1770 = vmatprep.subr.mxu0 0.0
        %1771 = vmatpush1.msra.mxu0 0.0
        %1772 = vmatprep.subr.mxu0 0.0
        %1773 = vmatpush1.msra.mxu0 0.0
        %1774 = vmatprep.subr.mxu0 0.0
        %1775 = vmatpush1.msra.mxu0 0.0
        %1776 = vmatprep.subr.mxu0 0.0
        %1777 = vmatpush1.msra.mxu0 0.0
        %1778 = vmatprep.subr.mxu0 0.0
        %1779 = vmatpush1.msra.mxu0 0.0
        %1780 = vmatprep.subr.mxu0 0.0
        %1781 = vmatpush1.msra.mxu0 0.0
        %1782 = vmatprep.subr.mxu0 0.0
        %1783 = vmatpush1.msra.mxu0 0.0
        %1784 = vmatprep.subr.mxu0 0.0
        %1785 = vmatpush1.msra.mxu0 0.0
        %1786 = vmatprep.subr.mxu0 0.0
        %1787 = vmatpush1.msra.mxu0 0.0
        %1788 = vmatprep.subr.mxu0 0.0
        %1789 = vmatpush1.msra.mxu0 0.0
        %1790 = vmatprep.subr.mxu0 0.0
        %1791 = vmatpush1.msra.mxu0 0.0
        %1792 = vmatprep.subr.mxu0 0.0
        %1793 = vmatpush1.msra.mxu0 0.0
        %1794 = vmatprep.subr.mxu0 0.0
        %1795 = vmatpush1.msra.mxu0 0.0
        %1796 = vmatprep.subr.mxu0 0.0
        %1797 = vmatpush1.msra.mxu0 0.0
        %1798 = vmatprep.subr.mxu0 0.0
        %1799 = vmatpush1.msra.mxu0 0.0
        %1800 = vmatprep.subr.mxu0 0.0
        %1801 = vmatpush1.msra.mxu0 0.0
        %1802 = vmatprep.mubr.f32.mxu0 0.0
        %1803 = vmatmul.mubr.f32.gmra.mrb[0].mxu0 %v1736
        %v1804 = vpop.f32.mrb[0].mxu0
        %v1805 = vadd.f32 %v1733, %v1804
        %v1806 = vpop.f32.mrb[0].mxu0
        %1807 = vdwg.mxu0
        %v1808 = vmul.f32 %v1805, 1.702
        %v1809 = vxor.u32 %v1808, 2147483648
        %v1810 = vmul.f32 %v1809, 1.442695
        %v1811 = vpow.pop %v1810
        %v1812 = vadd.f32 %v1811, 1.0
        %v1813 = vrcp.pop %v1812
        %v1814 = vmul.f32 1.0, %v1813
        %v1815 = vmul.f32 %v1805, %v1814
        %v1816 = vld [vmem:[%s15] sm:$0xff]
        %v1817 = vld [vmem:[%s15 + $0x8] sm:$0xff]
        %v1818 = vld [vmem:[%s15 + $0x10] sm:$0xff]
        %v1819 = vld [vmem:[%s15 + $0x18] sm:$0xff]
        %v1820 = vld [vmem:[%s15 + $0x20] sm:$0xff]
        %v1821 = vld [vmem:[%s15 + $0x28] sm:$0xff]
        %v1822 = vld [vmem:[%s15 + $0x30] sm:$0xff]
        %v1823 = vld [vmem:[%s15 + $0x38] sm:$0xff]
        %v1824 = vld [vmem:[%s15 + $0x40] sm:$0xff]
        %v1825 = vld [vmem:[%s15 + $0x48] sm:$0xff]
        %v1826 = vld [vmem:[%s15 + $0x50] sm:$0xff]
        %v1827 = vld [vmem:[%s15 + $0x58] sm:$0xff]
        %v1828 = vld [vmem:[%s15 + $0x60] sm:$0xff]
        %v1829 = vld [vmem:[%s15 + $0x68] sm:$0xff]
        %v1830 = vld [vmem:[%s15 + $0x70] sm:$0xff]
        %v1831 = vld [vmem:[%s15 + $0x78] sm:$0xff]
        %v1832 = vld [vmem:[%s16] sm:$0x1]
        %v1834 = vlaneseq
        %v1835 = vshrl.u32 %v1834, 7
        %v1836 = vsub.s32 0, %v1835
        %v1837 = vrot.slane %v1832, %v1836
        %1839 = vmatprep.subr.mxu0 0.0
        %1840 = vmatpush1.msra.mxu0 %v1816
        %1841 = vmatprep.subr.mxu0 0.0
        %1842 = vmatpush1.msra.mxu0 %v1817
        %1843 = vmatprep.subr.mxu0 0.0
        %1844 = vmatpush1.msra.mxu0 %v1818
        %1845 = vmatprep.subr.mxu0 0.0
        %1846 = vmatpush1.msra.mxu0 %v1819
        %1847 = vmatprep.subr.mxu0 0.0
        %1848 = vmatpush1.msra.mxu0 %v1820
        %1849 = vmatprep.subr.mxu0 0.0
        %1850 = vmatpush1.msra.mxu0 %v1821
        %1851 = vmatprep.subr.mxu0 0.0
        %1852 = vmatpush1.msra.mxu0 %v1822
        %1853 = vmatprep.subr.mxu0 0.0
        %1854 = vmatpush1.msra.mxu0 %v1823
        %1855 = vmatprep.subr.mxu0 0.0
        %1856 = vmatpush1.msra.mxu0 %v1824
        %1857 = vmatprep.subr.mxu0 0.0
        %1858 = vmatpush1.msra.mxu0 %v1825
        %1859 = vmatprep.subr.mxu0 0.0
        %1860 = vmatpush1.msra.mxu0 %v1826
        %1861 = vmatprep.subr.mxu0 0.0
        %1862 = vmatpush1.msra.mxu0 %v1827
        %1863 = vmatprep.subr.mxu0 0.0
        %1864 = vmatpush1.msra.mxu0 %v1828
        %1865 = vmatprep.subr.mxu0 0.0
        %1866 = vmatpush1.msra.mxu0 %v1829
        %1867 = vmatprep.subr.mxu0 0.0
        %1868 = vmatpush1.msra.mxu0 %v1830
        %1869 = vmatprep.subr.mxu0 0.0
        %1870 = vmatpush1.msra.mxu0 %v1831
        %1871 = vmatprep.subr.mxu0 0.0
        %1872 = vmatpush1.msra.mxu0 0.0
        %1873 = vmatprep.subr.mxu0 0.0
        %1874 = vmatpush1.msra.mxu0 0.0
        %1875 = vmatprep.subr.mxu0 0.0
        %1876 = vmatpush1.msra.mxu0 0.0
        %1877 = vmatprep.subr.mxu0 0.0
        %1878 = vmatpush1.msra.mxu0 0.0
        %1879 = vmatprep.subr.mxu0 0.0
        %1880 = vmatpush1.msra.mxu0 0.0
        %1881 = vmatprep.subr.mxu0 0.0
        %1882 = vmatpush1.msra.mxu0 0.0
        %1883 = vmatprep.subr.mxu0 0.0
        %1884 = vmatpush1.msra.mxu0 0.0
        %1885 = vmatprep.subr.mxu0 0.0
        %1886 = vmatpush1.msra.mxu0 0.0
        %1887 = vmatprep.subr.mxu0 0.0
        %1888 = vmatpush1.msra.mxu0 0.0
        %1889 = vmatprep.subr.mxu0 0.0
        %1890 = vmatpush1.msra.mxu0 0.0
        %1891 = vmatprep.subr.mxu0 0.0
        %1892 = vmatpush1.msra.mxu0 0.0
        %1893 = vmatprep.subr.mxu0 0.0
        %1894 = vmatpush1.msra.mxu0 0.0
        %1895 = vmatprep.subr.mxu0 0.0
        %1896 = vmatpush1.msra.mxu0 0.0
        %1897 = vmatprep.subr.mxu0 0.0
        %1898 = vmatpush1.msra.mxu0 0.0
        %1899 = vmatprep.subr.mxu0 0.0
        %1900 = vmatpush1.msra.mxu0 0.0
        %1901 = vmatprep.subr.mxu0 0.0
        %1902 = vmatpush1.msra.mxu0 0.0
        %1903 = vmatprep.mubr.f32.mxu0 0.0
        %1904 = vmatmul.mubr.f32.gmra.mrb[0].mxu0 %v1815
        %v1905 = vpop.f32.mrb[0].mxu0
        %v1906 = vadd.f32 %v1837, %v1905
        %v1907 = vpop.f32.mrb[0].mxu0
        %1908 = vdwg.mxu0
        %v1909 = vadd.f32 %v1693, %v1906
        %1910 = vst.msk [vmem:[%s570] sm:$0xff] %vm828, %v1909
        %s1911 = sand.u32 %s416, 1
        %s1912 = scalar_lea.sflag [#allocation8], %s1911
        %s1913 = sand.u32 %s416, 1
        %s1914 = smul.addr %s1913, 8
        %s1915 = scalar_lea.vmem [#allocation9], %s1914
        // Predicated region
        $region97: #{tpu_custom_call.1} parent=87 // pred_check
          %p1916 = pneg %p426
        $region98: #{tpu_custom_call.1} parent=87 // pred_check_branch
          %1918 = sbr.rel (%p1916) target = $region100
        $region99: #{tpu_custom_call.1} parent=87 // pred_region
          %s1920 = ssub.s32 128, 128
          %1921 = vsyncadd %s1912, %s1920
          %s1922 = smul.addr %s36, 2
          %s1923 = sadd.s32 %s37, %s1922
          %s1924 = smul.addr %s1923, 128
          %s1925 = scalar_lea.hbm %s17, %s1924
          %s1927 = sshll.u32 %s1915, 4
          %s1928 = int_to_ptr.vmem [resolvable:$true] %s1927
          %1930 = dma.vmem_to_hbm [thread:$0]  %s1928, 128, %s1925, %s1912
        $region100: #{tpu_custom_call.1} parent=87 // pred_fallthru
          _
      $region88: #{tpu_custom_call.1} parent=5 // pred_fallthru
        _
      %p1931 = scmp.le.s32.totalorder 2, %s27
      // Predicated region
      $region101: #{tpu_custom_call.1} parent=5 // pred_check
        %p1932 = pneg %p1931
      $region102: #{tpu_custom_call.1} parent=5 // pred_check_branch
        %1934 = sbr.rel (%p1932) target = $region104
      $region103: #{tpu_custom_call.1} parent=5 // pred_region
        %s1935 = ssub.s32 %s27, 2
        // Predicated region
        $region105: #{tpu_custom_call.1} parent=103 // pred_check
          %p1936 = pneg %p432
        $region106: #{tpu_custom_call.1} parent=103 // pred_check_branch
          %1938 = sbr.rel (%p1936) target = $region108
        $region107: #{tpu_custom_call.1} parent=103 // pred_region
          %s1939 = sand.u32 %s417, 1
          %s1940 = scalar_lea.sflag [#allocation8], %s1939
          %s1941 = sand.u32 %s417, 1
          %s1942 = smul.addr %s1941, 8
          %s1943 = scalar_lea.vmem [#allocation9], %s1942
          %1944 = dma.done %s1940, 128
        $region108: #{tpu_custom_call.1} parent=103 // pred_fallthru
          _
      $region104: #{tpu_custom_call.1} parent=5 // pred_fallthru
        _
    $region6: #{tpu_custom_call.1} parent=1 // loop_footer
      %s31 = sadd.s32 1, %s27
    $region7: #{tpu_custom_call.1} parent=1 // loop_footer_branch
      %26 = sbr.rel target = $region3
    $region8: #{tpu_custom_call.1} parent=1 // loop_exit
      _
    %1945 = vsyncpa [#allocation7], 1
    %s1946 = scalar_lea.sflag [#allocation7], 1
    %1947 = vsyncpa %s1946, 1
    %1948 = vsyncpa [#allocation8], 1
    %s1949 = scalar_lea.sflag [#allocation8], 1
    %1950 = vsyncpa %s1949, 1

</llo_original>
